<compile_context>
chip_gen: v7x
topology: tpu7x:2x2x1
jax: 0.10.0
libtpu: 0.0.40
codegen_flags: <defaults>
</compile_context>

<pallas_src>
import functools

import jax
import jax.numpy as jnp
from jax import lax
from jax.experimental import pallas as pl
from jax.experimental.pallas import tpu as pltpu

_EPS = 1e-5      # PyTorch BatchNorm3d default eps
_LANE = 128


def _round_up(x, m):
    return (x + m - 1) // m * m


def _patches_block_kernel(x_ref, w_ref, s_ref, o_ref, *, bc, h_out, w_out):
    """One B-block per grid step.

    x_ref: (1, 4, h_half, (w_out+1)*bc)  parity planes (ph*2+pw), lane = (w_col, b)
    w_ref: (1, 9, w_out*bc)              BN-scale-folded depthwise weights (f32)
    s_ref: (1, 1, w_out*bc)              beta - running_mean*scale (f32)
    o_ref: (1, h_out, w_out*bc)          conv + BN + ReLU result (I/O dtype)
    """
    wl = w_out * bc
    # Hoisted loads (review: avoid 9 per-tap row loads + broadcasts per step).
    w_all = w_ref[0]          # (9, wl) f32
    shift = s_ref[0]          # (1, wl) f32

    def row_body(oh, carry):
        acc = shift                                   # f32 accumulator, one row
        for kh in range(3):
            ph, dh = kh % 2, kh // 2
            for kw in range(3):
                pw, dw = kw % 2, kw // 2
                t = kh * 3 + kw
                # Input row 2*oh+kh, col 2*ow+kw  ==  plane (ph, pw), row oh+dh,
                # lane slice [dw*bc, dw*bc + w_out*bc)  (vreg-aligned: bc % 128 == 0).
                r = x_ref[0, ph * 2 + pw, pl.ds(oh + dh, 1), pl.ds(dw * bc, wl)]
                acc = acc + r.astype(jnp.float32) * w_all[t:t + 1, :]
        o_ref[0, pl.ds(oh, 1), :] = jnp.maximum(acc, 0.0).astype(o_ref.dtype)
        return carry

    # Row loop keeps the live set to a few vregs (review: bound intermediates).
    lax.fori_loop(0, h_out, row_body, 0, unroll=(h_out <= 32))


def patches_block_forward(x, conv_w, gamma, beta, running_mean, running_var,
                          eps=_EPS):
    """x: (N, C, D, H, W) NCDHW (f32 or bf16 — I/O dtype follows x.dtype).
       conv_w: (C, 1, 1, 3, 3) depthwise Conv3d weight (groups=C, bias=False).
       Returns (N, C, D, H_out, W_out), H_out = (H-3)//2 + 1, same for W."""
    n, c, d, h, w = x.shape
    io_dtype = x.dtype
    h_out = (h - 3) // 2 + 1
    w_out = (w - 3) // 2 + 1
    h_half = h_out + 1            # parity-plane rows actually needed
    w_half = w_out + 1
    b_total = n * c * d           # B order = (n, c, d): natural NCDHW flattening

    # ---- per-generation VMEM budget (review: v5e/v6e vs v7x) -----------------
    try:
        vmem_cap = pltpu.get_tpu_info().vmem_capacity_bytes
    except Exception:
        vmem_cap = 64 * 1024 * 1024                      # conservative (v7x per-TC)
    if vmem_cap >= 100 * 1024 * 1024:                    # v5e / v6e: 128 MiB
        budget, vmem_limit = 14 << 20, 64 << 20
    else:                                                # v7x: 64 MiB per TC
        budget, vmem_limit = 8 << 20, 48 << 20

    in_item = jnp.dtype(io_dtype).itemsize
    # Live bytes per b: double-buffered in/out/weight blocks + f32 row temps.
    live_per_b = (2 * (4 * h_half * w_half * in_item
                       + h_out * w_out * in_item
                       + 10 * w_out * 4)
                  + 4 * w_out * 4)
    bc_max = max(_LANE, (budget // live_per_b) // _LANE * _LANE)

    # Balanced blocks (review): pick num_blocks first, then a 128-aligned bc.
    nb = max(1, -(-b_total // bc_max))
    if nb == 1 and b_total > _LANE:
        nb = 2                     # keep both v7x TensorCores busy (megacore)
    bc = _round_up(-(-b_total // nb), _LANE)
    b_pad = nb * bc
    wl = w_out * bc                # output lane extent per block (multiple of 128)

    # ---- fold BN into the conv weights; per-lane weight/shift tables (f32) ---
    scale = (gamma / jnp.sqrt(running_var + eps)).astype(jnp.float32)
    shift = (beta - running_mean * scale).astype(jnp.float32)
    w_eff = conv_w[:, 0, 0].astype(jnp.float32) * scale[:, None, None]     # (C,3,3)
    w_flat = w_eff.reshape(c, 9).T                                         # (9,C)
    b_idx = jnp.arange(b_pad)
    chan = (b_idx // d) % c                      # channel of flattened (n, c, d)
    valid = (b_idx < b_total).astype(jnp.float32)
    w_tab = w_flat[:, chan] * valid              # (9, b_pad); padded lanes -> 0
    s_tab = shift[chan] * valid                  # (b_pad,);  padded lanes -> 0
    w_tab = w_tab.reshape(9, nb, bc).transpose(1, 0, 2)                    # (nb,9,bc)
    w_lane = jnp.broadcast_to(w_tab[:, :, None, :],
                              (nb, 9, w_out, bc)).reshape(nb, 9, wl)
    s_tab = s_tab.reshape(nb, 1, bc)
    s_lane = jnp.broadcast_to(s_tab[:, :, None, :],
                              (nb, 1, w_out, bc)).reshape(nb, 1, wl)

    # ---- input relayout: parity split + B-minor lanes (single transpose) -----
    xb = x.reshape(b_total, h, w).astype(io_dtype)
    xb = xb[:, :min(h, 2 * h_half), :min(w, 2 * w_half)]
    xb = jnp.pad(xb, ((0, b_pad - b_total),
                      (0, 2 * h_half - xb.shape[1]),
                      (0, 2 * w_half - xb.shape[2])))
    x_par = xb.reshape(nb, bc, h_half, 2, w_half, 2)
    x_par = jnp.transpose(x_par, (0, 3, 5, 2, 4, 1))   # (nb, ph, pw, h_half, w_half, bc)
    x_par = x_par.reshape(nb, 4, h_half, w_half * bc)

    kernel = functools.partial(_patches_block_kernel,
                               bc=bc, h_out=h_out, w_out=w_out)
    out_pal = pl.pallas_call(
        kernel,
        out_shape=jax.ShapeDtypeStruct((nb, h_out, wl), io_dtype),
        grid=(nb,),
        in_specs=[
            pl.BlockSpec((1, 4, h_half, w_half * bc), lambda i: (i, 0, 0, 0)),
            pl.BlockSpec((1, 9, wl), lambda i: (i, 0, 0)),
            pl.BlockSpec((1, 1, wl), lambda i: (i, 0, 0)),
        ],
        out_specs=pl.BlockSpec((1, h_out, wl), lambda i: (i, 0, 0)),
        compiler_params=pltpu.CompilerParams(
            dimension_semantics=("parallel",),
            vmem_limit_bytes=vmem_limit,
        ),
    )(x_par, w_lane, s_lane)

    # ---- back to NCDHW (single transpose; B order already (n, c, d)) ---------
    out = out_pal.reshape(nb, h_out, w_out, bc)
    out = jnp.transpose(out, (0, 3, 1, 2)).reshape(b_pad, h_out, w_out)
    out = out[:b_total].reshape(n, c, d, h_out, w_out)
    return out


def _reference_forward(x, conv_w, gamma, beta, running_mean, running_var, eps=_EPS):
    """Pure-JAX (f32) reference with identical semantics (for self-check)."""
    n, c, d, h, w = x.shape
    h_out = (h - 3) // 2 + 1
    w_out = (w - 3) // 2 + 1
    acc = jnp.zeros((n, c, d, h_out, w_out), jnp.float32)
    for kh in range(3):
        for kw in range(3):
            patch = x[:, :, :,
                      kh: kh + 2 * (h_out - 1) + 1: 2,
                      kw: kw + 2 * (w_out - 1) + 1: 2].astype(jnp.float32)
            wk = conv_w[:, 0, 0, kh, kw].reshape(1, c, 1, 1, 1)
            acc = acc + patch * wk
    scale = (gamma / jnp.sqrt(running_var + eps)).reshape(1, c, 1, 1, 1)
    shift = (beta - running_mean * (gamma / jnp.sqrt(running_var + eps))
             ).reshape(1, c, 1, 1, 1)
    return jnp.maximum(acc * scale + shift, 0.0)


if __name__ == "__main__":
    key = jax.random.PRNGKey(0)
    k_x, k_w, k_g, k_b, k_m, k_v = jax.random.split(key, 6)

    num_patches = 8                 # C (channels == groups)
    n, d, h, w = 2, 16, 16, 16      # x: (N, C, D, H, W) = (2, 8, 16, 16, 16); B = 256 -> 2 grid blocks

    x_f32 = jax.random.normal(k_x, (n, num_patches, d, h, w), dtype=jnp.float32)
    conv_w = 0.25 * jax.random.normal(k_w, (num_patches, 1, 1, 3, 3), jnp.float32)
    gamma = 1.0 + 0.1 * jax.random.normal(k_g, (num_patches,), jnp.float32)
    beta = 0.1 * jax.random.normal(k_b, (num_patches,), jnp.float32)
    running_mean = 0.1 * jax.random.normal(k_m, (num_patches,), jnp.float32)
    running_var = jnp.abs(jax.random.normal(k_v, (num_patches,), jnp.float32)) + 0.5

    fwd = jax.jit(patches_block_forward)
    h_out = (h - 3) // 2 + 1
    w_out = (w - 3) // 2 + 1

    # --- f32 I/O path ---------------------------------------------------------
    out_f32 = jax.block_until_ready(
        fwd(x_f32, conv_w, gamma, beta, running_mean, running_var))
    ref_f32 = _reference_forward(x_f32, conv_w, gamma, beta, running_mean, running_var)
    assert out_f32.shape == (n, num_patches, d, h_out, w_out), out_f32.shape
    err = float(jnp.max(jnp.abs(out_f32.astype(jnp.float32) - ref_f32)))
    assert err < 1e-4, f"f32 mismatch vs reference: {err}"

    # --- bf16 I/O path (bandwidth-optimal; f32 accumulation stays in-kernel) --
    x_bf16 = x_f32.astype(jnp.bfloat16)
    out_bf16 = jax.block_until_ready(
        fwd(x_bf16, conv_w, gamma, beta, running_mean, running_var))
    ref_bf16 = _reference_forward(x_bf16.astype(jnp.float32), conv_w, gamma, beta,
                                  running_mean, running_var)
    assert out_bf16.dtype == jnp.bfloat16
    tol = 2e-2 * (1.0 + float(jnp.max(jnp.abs(ref_bf16))))   # bf16 store rounding
    err = float(jnp.max(jnp.abs(out_bf16.astype(jnp.float32) - ref_bf16)))
    assert err < tol, f"bf16 mismatch vs reference: {err} (tol {tol})"

    print("KERNEL_OK")
</pallas_src>

<mosaic_0001>
module attributes {stable_mosaic.version = 11 : i64} {
  func.func @_patches_block_kernel(%arg0: i32, %arg1: memref<1x4x8x1024xf32, #tpu.memory_space<vmem>>, %arg2: memref<1x9x896xf32, #tpu.memory_space<vmem>>, %arg3: memref<1x1x896xf32, #tpu.memory_space<vmem>>, %arg4: memref<1x7x896xf32, #tpu.memory_space<vmem>>) attributes {dimension_semantics = [#tpu.dimension_semantics<parallel>], iteration_bounds = array<i64: 2>, scalar_prefetch = 0 : i64, scratch_operands = 0 : i64, tpu.core_type = #tpu.core_type<tc>, window_params = [{transform_indices = @transform_0, window_bounds = array<i64: 1, 4, 8, 1024>}, {transform_indices = @transform_1, window_bounds = array<i64: 1, 9, 896>}, {transform_indices = @transform_2, window_bounds = array<i64: 1, 1, 896>}, {transform_indices = @transform_3, window_bounds = array<i64: 1, 7, 896>}]} {
    %c0 = arith.constant 0 : index
    %c0_0 = arith.constant 0 : index
    %c0_1 = arith.constant 0 : index
    %0 = vector.load %arg2[%c0, %c0_0, %c0_1] : memref<1x9x896xf32, #tpu.memory_space<vmem>>, vector<1x9x896xf32>
    %1 = vector.shape_cast %0 : vector<1x9x896xf32> to vector<9x896xf32>
    %c0_2 = arith.constant 0 : index
    %c0_3 = arith.constant 0 : index
    %c0_4 = arith.constant 0 : index
    %2 = vector.load %arg3[%c0_2, %c0_3, %c0_4] : memref<1x1x896xf32, #tpu.memory_space<vmem>>, vector<1x1x896xf32>
    %3 = vector.shape_cast %2 : vector<1x1x896xf32> to vector<1x896xf32>
    %c0_i32 = arith.constant 0 : i32
    %c0_i32_5 = arith.constant 0 : i32
    %4 = arith.addi %c0_i32, %c0_i32_5 : i32
    %c0_6 = arith.constant 0 : index
    %c0_7 = arith.constant 0 : index
    %5 = arith.index_cast %4 : i32 to index
    %c0_8 = arith.constant 0 : index
    %6 = vector.load %arg1[%c0_6, %c0_7, %5, %c0_8] : memref<1x4x8x1024xf32, #tpu.memory_space<vmem>>, vector<1x1x1x896xf32>
    %7 = vector.shape_cast %6 : vector<1x1x1x896xf32> to vector<1x896xf32>
    %8 = vector.extract_strided_slice %1 {offsets = [0, 0], sizes = [1, 896], strides = [1, 1]} : vector<9x896xf32> to vector<1x896xf32>
    %9 = arith.mulf %7, %8 : vector<1x896xf32>
    %10 = arith.addf %3, %9 : vector<1x896xf32>
    %c0_i32_9 = arith.constant 0 : i32
    %11 = arith.addi %c0_i32, %c0_i32_9 : i32
    %c0_10 = arith.constant 0 : index
    %c1 = arith.constant 1 : index
    %12 = arith.index_cast %11 : i32 to index
    %c0_11 = arith.constant 0 : index
    %13 = vector.load %arg1[%c0_10, %c1, %12, %c0_11] : memref<1x4x8x1024xf32, #tpu.memory_space<vmem>>, vector<1x1x1x896xf32>
    %14 = vector.shape_cast %13 : vector<1x1x1x896xf32> to vector<1x896xf32>
    %15 = vector.extract_strided_slice %1 {offsets = [1, 0], sizes = [1, 896], strides = [1, 1]} : vector<9x896xf32> to vector<1x896xf32>
    %16 = arith.mulf %14, %15 : vector<1x896xf32>
    %17 = arith.addf %10, %16 : vector<1x896xf32>
    %c0_i32_12 = arith.constant 0 : i32
    %18 = arith.addi %c0_i32, %c0_i32_12 : i32
    %c0_13 = arith.constant 0 : index
    %c0_14 = arith.constant 0 : index
    %19 = arith.index_cast %18 : i32 to index
    %c128 = arith.constant 128 : index
    %20 = vector.load %arg1[%c0_13, %c0_14, %19, %c128] : memref<1x4x8x1024xf32, #tpu.memory_space<vmem>>, vector<1x1x1x896xf32>
    %21 = vector.shape_cast %20 : vector<1x1x1x896xf32> to vector<1x896xf32>
    %22 = vector.extract_strided_slice %1 {offsets = [2, 0], sizes = [1, 896], strides = [1, 1]} : vector<9x896xf32> to vector<1x896xf32>
    %23 = arith.mulf %21, %22 : vector<1x896xf32>
    %24 = arith.addf %17, %23 : vector<1x896xf32>
    %c0_i32_15 = arith.constant 0 : i32
    %25 = arith.addi %c0_i32, %c0_i32_15 : i32
    %c0_16 = arith.constant 0 : index
    %c2 = arith.constant 2 : index
    %26 = arith.index_cast %25 : i32 to index
    %c0_17 = arith.constant 0 : index
    %27 = vector.load %arg1[%c0_16, %c2, %26, %c0_17] : memref<1x4x8x1024xf32, #tpu.memory_space<vmem>>, vector<1x1x1x896xf32>
    %28 = vector.shape_cast %27 : vector<1x1x1x896xf32> to vector<1x896xf32>
    %29 = vector.extract_strided_slice %1 {offsets = [3, 0], sizes = [1, 896], strides = [1, 1]} : vector<9x896xf32> to vector<1x896xf32>
    %30 = arith.mulf %28, %29 : vector<1x896xf32>
    %31 = arith.addf %24, %30 : vector<1x896xf32>
    %c0_i32_18 = arith.constant 0 : i32
    %32 = arith.addi %c0_i32, %c0_i32_18 : i32
    %c0_19 = arith.constant 0 : index
    %c3 = arith.constant 3 : index
    %33 = arith.index_cast %32 : i32 to index
    %c0_20 = arith.constant 0 : index
    %34 = vector.load %arg1[%c0_19, %c3, %33, %c0_20] : memref<1x4x8x1024xf32, #tpu.memory_space<vmem>>, vector<1x1x1x896xf32>
    %35 = vector.shape_cast %34 : vector<1x1x1x896xf32> to vector<1x896xf32>
    %36 = vector.extract_strided_slice %1 {offsets = [4, 0], sizes = [1, 896], strides = [1, 1]} : vector<9x896xf32> to vector<1x896xf32>
    %37 = arith.mulf %35, %36 : vector<1x896xf32>
    %38 = arith.addf %31, %37 : vector<1x896xf32>
    %c0_i32_21 = arith.constant 0 : i32
    %39 = arith.addi %c0_i32, %c0_i32_21 : i32
    %c0_22 = arith.constant 0 : index
    %c2_23 = arith.constant 2 : index
    %40 = arith.index_cast %39 : i32 to index
    %c128_24 = arith.constant 128 : index
    %41 = vector.load %arg1[%c0_22, %c2_23, %40, %c128_24] : memref<1x4x8x1024xf32, #tpu.memory_space<vmem>>, vector<1x1x1x896xf32>
    %42 = vector.shape_cast %41 : vector<1x1x1x896xf32> to vector<1x896xf32>
    %43 = vector.extract_strided_slice %1 {offsets = [5, 0], sizes = [1, 896], strides = [1, 1]} : vector<9x896xf32> to vector<1x896xf32>
    %44 = arith.mulf %42, %43 : vector<1x896xf32>
    %45 = arith.addf %38, %44 : vector<1x896xf32>
    %c1_i32 = arith.constant 1 : i32
    %46 = arith.addi %c0_i32, %c1_i32 : i32
    %c0_25 = arith.constant 0 : index
    %c0_26 = arith.constant 0 : index
    %47 = arith.index_cast %46 : i32 to index
    %c0_27 = arith.constant 0 : index
    %48 = vector.load %arg1[%c0_25, %c0_26, %47, %c0_27] : memref<1x4x8x1024xf32, #tpu.memory_space<vmem>>, vector<1x1x1x896xf32>
    %49 = vector.shape_cast %48 : vector<1x1x1x896xf32> to vector<1x896xf32>
    %50 = vector.extract_strided_slice %1 {offsets = [6, 0], sizes = [1, 896], strides = [1, 1]} : vector<9x896xf32> to vector<1x896xf32>
    %51 = arith.mulf %49, %50 : vector<1x896xf32>
    %52 = arith.addf %45, %51 : vector<1x896xf32>
    %c1_i32_28 = arith.constant 1 : i32
    %53 = arith.addi %c0_i32, %c1_i32_28 : i32
    %c0_29 = arith.constant 0 : index
    %c1_30 = arith.constant 1 : index
    %54 = arith.index_cast %53 : i32 to index
    %c0_31 = arith.constant 0 : index
    %55 = vector.load %arg1[%c0_29, %c1_30, %54, %c0_31] : memref<1x4x8x1024xf32, #tpu.memory_space<vmem>>, vector<1x1x1x896xf32>
    %56 = vector.shape_cast %55 : vector<1x1x1x896xf32> to vector<1x896xf32>
    %57 = vector.extract_strided_slice %1 {offsets = [7, 0], sizes = [1, 896], strides = [1, 1]} : vector<9x896xf32> to vector<1x896xf32>
    %58 = arith.mulf %56, %57 : vector<1x896xf32>
    %59 = arith.addf %52, %58 : vector<1x896xf32>
    %c1_i32_32 = arith.constant 1 : i32
    %60 = arith.addi %c0_i32, %c1_i32_32 : i32
    %c0_33 = arith.constant 0 : index
    %c0_34 = arith.constant 0 : index
    %61 = arith.index_cast %60 : i32 to index
    %c128_35 = arith.constant 128 : index
    %62 = vector.load %arg1[%c0_33, %c0_34, %61, %c128_35] : memref<1x4x8x1024xf32, #tpu.memory_space<vmem>>, vector<1x1x1x896xf32>
    %63 = vector.shape_cast %62 : vector<1x1x1x896xf32> to vector<1x896xf32>
    %64 = vector.extract_strided_slice %1 {offsets = [8, 0], sizes = [1, 896], strides = [1, 1]} : vector<9x896xf32> to vector<1x896xf32>
    %65 = arith.mulf %63, %64 : vector<1x896xf32>
    %66 = arith.addf %59, %65 : vector<1x896xf32>
    %cst = arith.constant 0.000000e+00 : f32
    %67 = vector.broadcast %cst : f32 to vector<1x896xf32>
    %68 = arith.maximumf %66, %67 : vector<1x896xf32>
    %c0_36 = arith.constant 0 : index
    %69 = arith.index_cast %c0_i32 : i32 to index
    %c0_37 = arith.constant 0 : index
    %70 = vector.load %arg4[%c0_36, %69, %c0_37] : memref<1x7x896xf32, #tpu.memory_space<vmem>>, vector<1x1x896xf32>
    %71 = vector.shape_cast %70 : vector<1x1x896xf32> to vector<1x896xf32>
    %72 = vector.shape_cast %68 : vector<1x896xf32> to vector<1x1x896xf32>
    tpu.vector_store %arg4[%c0_36, %69, %c0_37], %72 {strides = array<i32>} : memref<1x7x896xf32, #tpu.memory_space<vmem>>, vector<1x1x896xf32>,
    %c1_i32_38 = arith.constant 1 : i32
    %c0_i32_39 = arith.constant 0 : i32
    %73 = arith.addi %c1_i32_38, %c0_i32_39 : i32
    %c0_40 = arith.constant 0 : index
    %c0_41 = arith.constant 0 : index
    %74 = arith.index_cast %73 : i32 to index
    %c0_42 = arith.constant 0 : index
    %75 = vector.load %arg1[%c0_40, %c0_41, %74, %c0_42] : memref<1x4x8x1024xf32, #tpu.memory_space<vmem>>, vector<1x1x1x896xf32>
    %76 = vector.shape_cast %75 : vector<1x1x1x896xf32> to vector<1x896xf32>
    %77 = vector.extract_strided_slice %1 {offsets = [0, 0], sizes = [1, 896], strides = [1, 1]} : vector<9x896xf32> to vector<1x896xf32>
    %78 = arith.mulf %76, %77 : vector<1x896xf32>
    %79 = arith.addf %3, %78 : vector<1x896xf32>
    %c0_i32_43 = arith.constant 0 : i32
    %80 = arith.addi %c1_i32_38, %c0_i32_43 : i32
    %c0_44 = arith.constant 0 : index
    %c1_45 = arith.constant 1 : index
    %81 = arith.index_cast %80 : i32 to index
    %c0_46 = arith.constant 0 : index
    %82 = vector.load %arg1[%c0_44, %c1_45, %81, %c0_46] : memref<1x4x8x1024xf32, #tpu.memory_space<vmem>>, vector<1x1x1x896xf32>
    %83 = vector.shape_cast %82 : vector<1x1x1x896xf32> to vector<1x896xf32>
    %84 = vector.extract_strided_slice %1 {offsets = [1, 0], sizes = [1, 896], strides = [1, 1]} : vector<9x896xf32> to vector<1x896xf32>
    %85 = arith.mulf %83, %84 : vector<1x896xf32>
    %86 = arith.addf %79, %85 : vector<1x896xf32>
    %c0_i32_47 = arith.constant 0 : i32
    %87 = arith.addi %c1_i32_38, %c0_i32_47 : i32
    %c0_48 = arith.constant 0 : index
    %c0_49 = arith.constant 0 : index
    %88 = arith.index_cast %87 : i32 to index
    %c128_50 = arith.constant 128 : index
    %89 = vector.load %arg1[%c0_48, %c0_49, %88, %c128_50] : memref<1x4x8x1024xf32, #tpu.memory_space<vmem>>, vector<1x1x1x896xf32>
    %90 = vector.shape_cast %89 : vector<1x1x1x896xf32> to vector<1x896xf32>
    %91 = vector.extract_strided_slice %1 {offsets = [2, 0], sizes = [1, 896], strides = [1, 1]} : vector<9x896xf32> to vector<1x896xf32>
    %92 = arith.mulf %90, %91 : vector<1x896xf32>
    %93 = arith.addf %86, %92 : vector<1x896xf32>
    %c0_i32_51 = arith.constant 0 : i32
    %94 = arith.addi %c1_i32_38, %c0_i32_51 : i32
    %c0_52 = arith.constant 0 : index
    %c2_53 = arith.constant 2 : index
    %95 = arith.index_cast %94 : i32 to index
    %c0_54 = arith.constant 0 : index
    %96 = vector.load %arg1[%c0_52, %c2_53, %95, %c0_54] : memref<1x4x8x1024xf32, #tpu.memory_space<vmem>>, vector<1x1x1x896xf32>
    %97 = vector.shape_cast %96 : vector<1x1x1x896xf32> to vector<1x896xf32>
    %98 = vector.extract_strided_slice %1 {offsets = [3, 0], sizes = [1, 896], strides = [1, 1]} : vector<9x896xf32> to vector<1x896xf32>
    %99 = arith.mulf %97, %98 : vector<1x896xf32>
    %100 = arith.addf %93, %99 : vector<1x896xf32>
    %c0_i32_55 = arith.constant 0 : i32
    %101 = arith.addi %c1_i32_38, %c0_i32_55 : i32
    %c0_56 = arith.constant 0 : index
    %c3_57 = arith.constant 3 : index
    %102 = arith.index_cast %101 : i32 to index
    %c0_58 = arith.constant 0 : index
    %103 = vector.load %arg1[%c0_56, %c3_57, %102, %c0_58] : memref<1x4x8x1024xf32, #tpu.memory_space<vmem>>, vector<1x1x1x896xf32>
    %104 = vector.shape_cast %103 : vector<1x1x1x896xf32> to vector<1x896xf32>
    %105 = vector.extract_strided_slice %1 {offsets = [4, 0], sizes = [1, 896], strides = [1, 1]} : vector<9x896xf32> to vector<1x896xf32>
    %106 = arith.mulf %104, %105 : vector<1x896xf32>
    %107 = arith.addf %100, %106 : vector<1x896xf32>
    %c0_i32_59 = arith.constant 0 : i32
    %108 = arith.addi %c1_i32_38, %c0_i32_59 : i32
    %c0_60 = arith.constant 0 : index
    %c2_61 = arith.constant 2 : index
    %109 = arith.index_cast %108 : i32 to index
    %c128_62 = arith.constant 128 : index
    %110 = vector.load %arg1[%c0_60, %c2_61, %109, %c128_62] : memref<1x4x8x1024xf32, #tpu.memory_space<vmem>>, vector<1x1x1x896xf32>
    %111 = vector.shape_cast %110 : vector<1x1x1x896xf32> to vector<1x896xf32>
    %112 = vector.extract_strided_slice %1 {offsets = [5, 0], sizes = [1, 896], strides = [1, 1]} : vector<9x896xf32> to vector<1x896xf32>
    %113 = arith.mulf %111, %112 : vector<1x896xf32>
    %114 = arith.addf %107, %113 : vector<1x896xf32>
    %c1_i32_63 = arith.constant 1 : i32
    %115 = arith.addi %c1_i32_38, %c1_i32_63 : i32
    %c0_64 = arith.constant 0 : index
    %c0_65 = arith.constant 0 : index
    %116 = arith.index_cast %115 : i32 to index
    %c0_66 = arith.constant 0 : index
    %117 = vector.load %arg1[%c0_64, %c0_65, %116, %c0_66] : memref<1x4x8x1024xf32, #tpu.memory_space<vmem>>, vector<1x1x1x896xf32>
    %118 = vector.shape_cast %117 : vector<1x1x1x896xf32> to vector<1x896xf32>
    %119 = vector.extract_strided_slice %1 {offsets = [6, 0], sizes = [1, 896], strides = [1, 1]} : vector<9x896xf32> to vector<1x896xf32>
    %120 = arith.mulf %118, %119 : vector<1x896xf32>
    %121 = arith.addf %114, %120 : vector<1x896xf32>
    %c1_i32_67 = arith.constant 1 : i32
    %122 = arith.addi %c1_i32_38, %c1_i32_67 : i32
    %c0_68 = arith.constant 0 : index
    %c1_69 = arith.constant 1 : index
    %123 = arith.index_cast %122 : i32 to index
    %c0_70 = arith.constant 0 : index
    %124 = vector.load %arg1[%c0_68, %c1_69, %123, %c0_70] : memref<1x4x8x1024xf32, #tpu.memory_space<vmem>>, vector<1x1x1x896xf32>
    %125 = vector.shape_cast %124 : vector<1x1x1x896xf32> to vector<1x896xf32>
    %126 = vector.extract_strided_slice %1 {offsets = [7, 0], sizes = [1, 896], strides = [1, 1]} : vector<9x896xf32> to vector<1x896xf32>
    %127 = arith.mulf %125, %126 : vector<1x896xf32>
    %128 = arith.addf %121, %127 : vector<1x896xf32>
    %c1_i32_71 = arith.constant 1 : i32
    %129 = arith.addi %c1_i32_38, %c1_i32_71 : i32
    %c0_72 = arith.constant 0 : index
    %c0_73 = arith.constant 0 : index
    %130 = arith.index_cast %129 : i32 to index
    %c128_74 = arith.constant 128 : index
    %131 = vector.load %arg1[%c0_72, %c0_73, %130, %c128_74] : memref<1x4x8x1024xf32, #tpu.memory_space<vmem>>, vector<1x1x1x896xf32>
    %132 = vector.shape_cast %131 : vector<1x1x1x896xf32> to vector<1x896xf32>
    %133 = vector.extract_strided_slice %1 {offsets = [8, 0], sizes = [1, 896], strides = [1, 1]} : vector<9x896xf32> to vector<1x896xf32>
    %134 = arith.mulf %132, %133 : vector<1x896xf32>
    %135 = arith.addf %128, %134 : vector<1x896xf32>
    %cst_75 = arith.constant 0.000000e+00 : f32
    %136 = vector.broadcast %cst_75 : f32 to vector<1x896xf32>
    %137 = arith.maximumf %135, %136 : vector<1x896xf32>
    %c0_76 = arith.constant 0 : index
    %138 = arith.index_cast %c1_i32_38 : i32 to index
    %c0_77 = arith.constant 0 : index
    %139 = vector.load %arg4[%c0_76, %138, %c0_77] : memref<1x7x896xf32, #tpu.memory_space<vmem>>, vector<1x1x896xf32>
    %140 = vector.shape_cast %139 : vector<1x1x896xf32> to vector<1x896xf32>
    %141 = vector.shape_cast %137 : vector<1x896xf32> to vector<1x1x896xf32>
    tpu.vector_store %arg4[%c0_76, %138, %c0_77], %141 {strides = array<i32>} : memref<1x7x896xf32, #tpu.memory_space<vmem>>, vector<1x1x896xf32>,
    %c2_i32 = arith.constant 2 : i32
    %c0_i32_78 = arith.constant 0 : i32
    %142 = arith.addi %c2_i32, %c0_i32_78 : i32
    %c0_79 = arith.constant 0 : index
    %c0_80 = arith.constant 0 : index
    %143 = arith.index_cast %142 : i32 to index
    %c0_81 = arith.constant 0 : index
    %144 = vector.load %arg1[%c0_79, %c0_80, %143, %c0_81] : memref<1x4x8x1024xf32, #tpu.memory_space<vmem>>, vector<1x1x1x896xf32>
    %145 = vector.shape_cast %144 : vector<1x1x1x896xf32> to vector<1x896xf32>
    %146 = vector.extract_strided_slice %1 {offsets = [0, 0], sizes = [1, 896], strides = [1, 1]} : vector<9x896xf32> to vector<1x896xf32>
    %147 = arith.mulf %145, %146 : vector<1x896xf32>
    %148 = arith.addf %3, %147 : vector<1x896xf32>
    %c0_i32_82 = arith.constant 0 : i32
    %149 = arith.addi %c2_i32, %c0_i32_82 : i32
    %c0_83 = arith.constant 0 : index
    %c1_84 = arith.constant 1 : index
    %150 = arith.index_cast %149 : i32 to index
    %c0_85 = arith.constant 0 : index
    %151 = vector.load %arg1[%c0_83, %c1_84, %150, %c0_85] : memref<1x4x8x1024xf32, #tpu.memory_space<vmem>>, vector<1x1x1x896xf32>
    %152 = vector.shape_cast %151 : vector<1x1x1x896xf32> to vector<1x896xf32>
    %153 = vector.extract_strided_slice %1 {offsets = [1, 0], sizes = [1, 896], strides = [1, 1]} : vector<9x896xf32> to vector<1x896xf32>
    %154 = arith.mulf %152, %153 : vector<1x896xf32>
    %155 = arith.addf %148, %154 : vector<1x896xf32>
    %c0_i32_86 = arith.constant 0 : i32
    %156 = arith.addi %c2_i32, %c0_i32_86 : i32
    %c0_87 = arith.constant 0 : index
    %c0_88 = arith.constant 0 : index
    %157 = arith.index_cast %156 : i32 to index
    %c128_89 = arith.constant 128 : index
    %158 = vector.load %arg1[%c0_87, %c0_88, %157, %c128_89] : memref<1x4x8x1024xf32, #tpu.memory_space<vmem>>, vector<1x1x1x896xf32>
    %159 = vector.shape_cast %158 : vector<1x1x1x896xf32> to vector<1x896xf32>
    %160 = vector.extract_strided_slice %1 {offsets = [2, 0], sizes = [1, 896], strides = [1, 1]} : vector<9x896xf32> to vector<1x896xf32>
    %161 = arith.mulf %159, %160 : vector<1x896xf32>
    %162 = arith.addf %155, %161 : vector<1x896xf32>
    %c0_i32_90 = arith.constant 0 : i32
    %163 = arith.addi %c2_i32, %c0_i32_90 : i32
    %c0_91 = arith.constant 0 : index
    %c2_92 = arith.constant 2 : index
    %164 = arith.index_cast %163 : i32 to index
    %c0_93 = arith.constant 0 : index
    %165 = vector.load %arg1[%c0_91, %c2_92, %164, %c0_93] : memref<1x4x8x1024xf32, #tpu.memory_space<vmem>>, vector<1x1x1x896xf32>
    %166 = vector.shape_cast %165 : vector<1x1x1x896xf32> to vector<1x896xf32>
    %167 = vector.extract_strided_slice %1 {offsets = [3, 0], sizes = [1, 896], strides = [1, 1]} : vector<9x896xf32> to vector<1x896xf32>
    %168 = arith.mulf %166, %167 : vector<1x896xf32>
    %169 = arith.addf %162, %168 : vector<1x896xf32>
    %c0_i32_94 = arith.constant 0 : i32
    %170 = arith.addi %c2_i32, %c0_i32_94 : i32
    %c0_95 = arith.constant 0 : index
    %c3_96 = arith.constant 3 : index
    %171 = arith.index_cast %170 : i32 to index
    %c0_97 = arith.constant 0 : index
    %172 = vector.load %arg1[%c0_95, %c3_96, %171, %c0_97] : memref<1x4x8x1024xf32, #tpu.memory_space<vmem>>, vector<1x1x1x896xf32>
    %173 = vector.shape_cast %172 : vector<1x1x1x896xf32> to vector<1x896xf32>
    %174 = vector.extract_strided_slice %1 {offsets = [4, 0], sizes = [1, 896], strides = [1, 1]} : vector<9x896xf32> to vector<1x896xf32>
    %175 = arith.mulf %173, %174 : vector<1x896xf32>
    %176 = arith.addf %169, %175 : vector<1x896xf32>
    %c0_i32_98 = arith.constant 0 : i32
    %177 = arith.addi %c2_i32, %c0_i32_98 : i32
    %c0_99 = arith.constant 0 : index
    %c2_100 = arith.constant 2 : index
    %178 = arith.index_cast %177 : i32 to index
    %c128_101 = arith.constant 128 : index
    %179 = vector.load %arg1[%c0_99, %c2_100, %178, %c128_101] : memref<1x4x8x1024xf32, #tpu.memory_space<vmem>>, vector<1x1x1x896xf32>
    %180 = vector.shape_cast %179 : vector<1x1x1x896xf32> to vector<1x896xf32>
    %181 = vector.extract_strided_slice %1 {offsets = [5, 0], sizes = [1, 896], strides = [1, 1]} : vector<9x896xf32> to vector<1x896xf32>
    %182 = arith.mulf %180, %181 : vector<1x896xf32>
    %183 = arith.addf %176, %182 : vector<1x896xf32>
    %c1_i32_102 = arith.constant 1 : i32
    %184 = arith.addi %c2_i32, %c1_i32_102 : i32
    %c0_103 = arith.constant 0 : index
    %c0_104 = arith.constant 0 : index
    %185 = arith.index_cast %184 : i32 to index
    %c0_105 = arith.constant 0 : index
    %186 = vector.load %arg1[%c0_103, %c0_104, %185, %c0_105] : memref<1x4x8x1024xf32, #tpu.memory_space<vmem>>, vector<1x1x1x896xf32>
    %187 = vector.shape_cast %186 : vector<1x1x1x896xf32> to vector<1x896xf32>
    %188 = vector.extract_strided_slice %1 {offsets = [6, 0], sizes = [1, 896], strides = [1, 1]} : vector<9x896xf32> to vector<1x896xf32>
    %189 = arith.mulf %187, %188 : vector<1x896xf32>
    %190 = arith.addf %183, %189 : vector<1x896xf32>
    %c1_i32_106 = arith.constant 1 : i32
    %191 = arith.addi %c2_i32, %c1_i32_106 : i32
    %c0_107 = arith.constant 0 : index
    %c1_108 = arith.constant 1 : index
    %192 = arith.index_cast %191 : i32 to index
    %c0_109 = arith.constant 0 : index
    %193 = vector.load %arg1[%c0_107, %c1_108, %192, %c0_109] : memref<1x4x8x1024xf32, #tpu.memory_space<vmem>>, vector<1x1x1x896xf32>
    %194 = vector.shape_cast %193 : vector<1x1x1x896xf32> to vector<1x896xf32>
    %195 = vector.extract_strided_slice %1 {offsets = [7, 0], sizes = [1, 896], strides = [1, 1]} : vector<9x896xf32> to vector<1x896xf32>
    %196 = arith.mulf %194, %195 : vector<1x896xf32>
    %197 = arith.addf %190, %196 : vector<1x896xf32>
    %c1_i32_110 = arith.constant 1 : i32
    %198 = arith.addi %c2_i32, %c1_i32_110 : i32
    %c0_111 = arith.constant 0 : index
    %c0_112 = arith.constant 0 : index
    %199 = arith.index_cast %198 : i32 to index
    %c128_113 = arith.constant 128 : index
    %200 = vector.load %arg1[%c0_111, %c0_112, %199, %c128_113] : memref<1x4x8x1024xf32, #tpu.memory_space<vmem>>, vector<1x1x1x896xf32>
    %201 = vector.shape_cast %200 : vector<1x1x1x896xf32> to vector<1x896xf32>
    %202 = vector.extract_strided_slice %1 {offsets = [8, 0], sizes = [1, 896], strides = [1, 1]} : vector<9x896xf32> to vector<1x896xf32>
    %203 = arith.mulf %201, %202 : vector<1x896xf32>
    %204 = arith.addf %197, %203 : vector<1x896xf32>
    %cst_114 = arith.constant 0.000000e+00 : f32
    %205 = vector.broadcast %cst_114 : f32 to vector<1x896xf32>
    %206 = arith.maximumf %204, %205 : vector<1x896xf32>
    %c0_115 = arith.constant 0 : index
    %207 = arith.index_cast %c2_i32 : i32 to index
    %c0_116 = arith.constant 0 : index
    %208 = vector.load %arg4[%c0_115, %207, %c0_116] : memref<1x7x896xf32, #tpu.memory_space<vmem>>, vector<1x1x896xf32>
    %209 = vector.shape_cast %208 : vector<1x1x896xf32> to vector<1x896xf32>
    %210 = vector.shape_cast %206 : vector<1x896xf32> to vector<1x1x896xf32>
    tpu.vector_store %arg4[%c0_115, %207, %c0_116], %210 {strides = array<i32>} : memref<1x7x896xf32, #tpu.memory_space<vmem>>, vector<1x1x896xf32>,
    %c3_i32 = arith.constant 3 : i32
    %c0_i32_117 = arith.constant 0 : i32
    %211 = arith.addi %c3_i32, %c0_i32_117 : i32
    %c0_118 = arith.constant 0 : index
    %c0_119 = arith.constant 0 : index
    %212 = arith.index_cast %211 : i32 to index
    %c0_120 = arith.constant 0 : index
    %213 = vector.load %arg1[%c0_118, %c0_119, %212, %c0_120] : memref<1x4x8x1024xf32, #tpu.memory_space<vmem>>, vector<1x1x1x896xf32>
    %214 = vector.shape_cast %213 : vector<1x1x1x896xf32> to vector<1x896xf32>
    %215 = vector.extract_strided_slice %1 {offsets = [0, 0], sizes = [1, 896], strides = [1, 1]} : vector<9x896xf32> to vector<1x896xf32>
    %216 = arith.mulf %214, %215 : vector<1x896xf32>
    %217 = arith.addf %3, %216 : vector<1x896xf32>
    %c0_i32_121 = arith.constant 0 : i32
    %218 = arith.addi %c3_i32, %c0_i32_121 : i32
    %c0_122 = arith.constant 0 : index
    %c1_123 = arith.constant 1 : index
    %219 = arith.index_cast %218 : i32 to index
    %c0_124 = arith.constant 0 : index
    %220 = vector.load %arg1[%c0_122, %c1_123, %219, %c0_124] : memref<1x4x8x1024xf32, #tpu.memory_space<vmem>>, vector<1x1x1x896xf32>
    %221 = vector.shape_cast %220 : vector<1x1x1x896xf32> to vector<1x896xf32>
    %222 = vector.extract_strided_slice %1 {offsets = [1, 0], sizes = [1, 896], strides = [1, 1]} : vector<9x896xf32> to vector<1x896xf32>
    %223 = arith.mulf %221, %222 : vector<1x896xf32>
    %224 = arith.addf %217, %223 : vector<1x896xf32>
    %c0_i32_125 = arith.constant 0 : i32
    %225 = arith.addi %c3_i32, %c0_i32_125 : i32
    %c0_126 = arith.constant 0 : index
    %c0_127 = arith.constant 0 : index
    %226 = arith.index_cast %225 : i32 to index
    %c128_128 = arith.constant 128 : index
    %227 = vector.load %arg1[%c0_126, %c0_127, %226, %c128_128] : memref<1x4x8x1024xf32, #tpu.memory_space<vmem>>, vector<1x1x1x896xf32>
    %228 = vector.shape_cast %227 : vector<1x1x1x896xf32> to vector<1x896xf32>
    %229 = vector.extract_strided_slice %1 {offsets = [2, 0], sizes = [1, 896], strides = [1, 1]} : vector<9x896xf32> to vector<1x896xf32>
    %230 = arith.mulf %228, %229 : vector<1x896xf32>
    %231 = arith.addf %224, %230 : vector<1x896xf32>
    %c0_i32_129 = arith.constant 0 : i32
    %232 = arith.addi %c3_i32, %c0_i32_129 : i32
    %c0_130 = arith.constant 0 : index
    %c2_131 = arith.constant 2 : index
    %233 = arith.index_cast %232 : i32 to index
    %c0_132 = arith.constant 0 : index
    %234 = vector.load %arg1[%c0_130, %c2_131, %233, %c0_132] : memref<1x4x8x1024xf32, #tpu.memory_space<vmem>>, vector<1x1x1x896xf32>
    %235 = vector.shape_cast %234 : vector<1x1x1x896xf32> to vector<1x896xf32>
    %236 = vector.extract_strided_slice %1 {offsets = [3, 0], sizes = [1, 896], strides = [1, 1]} : vector<9x896xf32> to vector<1x896xf32>
    %237 = arith.mulf %235, %236 : vector<1x896xf32>
    %238 = arith.addf %231, %237 : vector<1x896xf32>
    %c0_i32_133 = arith.constant 0 : i32
    %239 = arith.addi %c3_i32, %c0_i32_133 : i32
    %c0_134 = arith.constant 0 : index
    %c3_135 = arith.constant 3 : index
    %240 = arith.index_cast %239 : i32 to index
    %c0_136 = arith.constant 0 : index
    %241 = vector.load %arg1[%c0_134, %c3_135, %240, %c0_136] : memref<1x4x8x1024xf32, #tpu.memory_space<vmem>>, vector<1x1x1x896xf32>
    %242 = vector.shape_cast %241 : vector<1x1x1x896xf32> to vector<1x896xf32>
    %243 = vector.extract_strided_slice %1 {offsets = [4, 0], sizes = [1, 896], strides = [1, 1]} : vector<9x896xf32> to vector<1x896xf32>
    %244 = arith.mulf %242, %243 : vector<1x896xf32>
    %245 = arith.addf %238, %244 : vector<1x896xf32>
    %c0_i32_137 = arith.constant 0 : i32
    %246 = arith.addi %c3_i32, %c0_i32_137 : i32
    %c0_138 = arith.constant 0 : index
    %c2_139 = arith.constant 2 : index
    %247 = arith.index_cast %246 : i32 to index
    %c128_140 = arith.constant 128 : index
    %248 = vector.load %arg1[%c0_138, %c2_139, %247, %c128_140] : memref<1x4x8x1024xf32, #tpu.memory_space<vmem>>, vector<1x1x1x896xf32>
    %249 = vector.shape_cast %248 : vector<1x1x1x896xf32> to vector<1x896xf32>
    %250 = vector.extract_strided_slice %1 {offsets = [5, 0], sizes = [1, 896], strides = [1, 1]} : vector<9x896xf32> to vector<1x896xf32>
    %251 = arith.mulf %249, %250 : vector<1x896xf32>
    %252 = arith.addf %245, %251 : vector<1x896xf32>
    %c1_i32_141 = arith.constant 1 : i32
    %253 = arith.addi %c3_i32, %c1_i32_141 : i32
    %c0_142 = arith.constant 0 : index
    %c0_143 = arith.constant 0 : index
    %254 = arith.index_cast %253 : i32 to index
    %c0_144 = arith.constant 0 : index
    %255 = vector.load %arg1[%c0_142, %c0_143, %254, %c0_144] : memref<1x4x8x1024xf32, #tpu.memory_space<vmem>>, vector<1x1x1x896xf32>
    %256 = vector.shape_cast %255 : vector<1x1x1x896xf32> to vector<1x896xf32>
    %257 = vector.extract_strided_slice %1 {offsets = [6, 0], sizes = [1, 896], strides = [1, 1]} : vector<9x896xf32> to vector<1x896xf32>
    %258 = arith.mulf %256, %257 : vector<1x896xf32>
    %259 = arith.addf %252, %258 : vector<1x896xf32>
    %c1_i32_145 = arith.constant 1 : i32
    %260 = arith.addi %c3_i32, %c1_i32_145 : i32
    %c0_146 = arith.constant 0 : index
    %c1_147 = arith.constant 1 : index
    %261 = arith.index_cast %260 : i32 to index
    %c0_148 = arith.constant 0 : index
    %262 = vector.load %arg1[%c0_146, %c1_147, %261, %c0_148] : memref<1x4x8x1024xf32, #tpu.memory_space<vmem>>, vector<1x1x1x896xf32>
    %263 = vector.shape_cast %262 : vector<1x1x1x896xf32> to vector<1x896xf32>
    %264 = vector.extract_strided_slice %1 {offsets = [7, 0], sizes = [1, 896], strides = [1, 1]} : vector<9x896xf32> to vector<1x896xf32>
    %265 = arith.mulf %263, %264 : vector<1x896xf32>
    %266 = arith.addf %259, %265 : vector<1x896xf32>
    %c1_i32_149 = arith.constant 1 : i32
    %267 = arith.addi %c3_i32, %c1_i32_149 : i32
    %c0_150 = arith.constant 0 : index
    %c0_151 = arith.constant 0 : index
    %268 = arith.index_cast %267 : i32 to index
    %c128_152 = arith.constant 128 : index
    %269 = vector.load %arg1[%c0_150, %c0_151, %268, %c128_152] : memref<1x4x8x1024xf32, #tpu.memory_space<vmem>>, vector<1x1x1x896xf32>
    %270 = vector.shape_cast %269 : vector<1x1x1x896xf32> to vector<1x896xf32>
    %271 = vector.extract_strided_slice %1 {offsets = [8, 0], sizes = [1, 896], strides = [1, 1]} : vector<9x896xf32> to vector<1x896xf32>
    %272 = arith.mulf %270, %271 : vector<1x896xf32>
    %273 = arith.addf %266, %272 : vector<1x896xf32>
    %cst_153 = arith.constant 0.000000e+00 : f32
    %274 = vector.broadcast %cst_153 : f32 to vector<1x896xf32>
    %275 = arith.maximumf %273, %274 : vector<1x896xf32>
    %c0_154 = arith.constant 0 : index
    %276 = arith.index_cast %c3_i32 : i32 to index
    %c0_155 = arith.constant 0 : index
    %277 = vector.load %arg4[%c0_154, %276, %c0_155] : memref<1x7x896xf32, #tpu.memory_space<vmem>>, vector<1x1x896xf32>
    %278 = vector.shape_cast %277 : vector<1x1x896xf32> to vector<1x896xf32>
    %279 = vector.shape_cast %275 : vector<1x896xf32> to vector<1x1x896xf32>
    tpu.vector_store %arg4[%c0_154, %276, %c0_155], %279 {strides = array<i32>} : memref<1x7x896xf32, #tpu.memory_space<vmem>>, vector<1x1x896xf32>,
    %c4_i32 = arith.constant 4 : i32
    %c0_i32_156 = arith.constant 0 : i32
    %280 = arith.addi %c4_i32, %c0_i32_156 : i32
    %c0_157 = arith.constant 0 : index
    %c0_158 = arith.constant 0 : index
    %281 = arith.index_cast %280 : i32 to index
    %c0_159 = arith.constant 0 : index
    %282 = vector.load %arg1[%c0_157, %c0_158, %281, %c0_159] : memref<1x4x8x1024xf32, #tpu.memory_space<vmem>>, vector<1x1x1x896xf32>
    %283 = vector.shape_cast %282 : vector<1x1x1x896xf32> to vector<1x896xf32>
    %284 = vector.extract_strided_slice %1 {offsets = [0, 0], sizes = [1, 896], strides = [1, 1]} : vector<9x896xf32> to vector<1x896xf32>
    %285 = arith.mulf %283, %284 : vector<1x896xf32>
    %286 = arith.addf %3, %285 : vector<1x896xf32>
    %c0_i32_160 = arith.constant 0 : i32
    %287 = arith.addi %c4_i32, %c0_i32_160 : i32
    %c0_161 = arith.constant 0 : index
    %c1_162 = arith.constant 1 : index
    %288 = arith.index_cast %287 : i32 to index
    %c0_163 = arith.constant 0 : index
    %289 = vector.load %arg1[%c0_161, %c1_162, %288, %c0_163] : memref<1x4x8x1024xf32, #tpu.memory_space<vmem>>, vector<1x1x1x896xf32>
    %290 = vector.shape_cast %289 : vector<1x1x1x896xf32> to vector<1x896xf32>
    %291 = vector.extract_strided_slice %1 {offsets = [1, 0], sizes = [1, 896], strides = [1, 1]} : vector<9x896xf32> to vector<1x896xf32>
    %292 = arith.mulf %290, %291 : vector<1x896xf32>
    %293 = arith.addf %286, %292 : vector<1x896xf32>
    %c0_i32_164 = arith.constant 0 : i32
    %294 = arith.addi %c4_i32, %c0_i32_164 : i32
    %c0_165 = arith.constant 0 : index
    %c0_166 = arith.constant 0 : index
    %295 = arith.index_cast %294 : i32 to index
    %c128_167 = arith.constant 128 : index
    %296 = vector.load %arg1[%c0_165, %c0_166, %295, %c128_167] : memref<1x4x8x1024xf32, #tpu.memory_space<vmem>>, vector<1x1x1x896xf32>
    %297 = vector.shape_cast %296 : vector<1x1x1x896xf32> to vector<1x896xf32>
    %298 = vector.extract_strided_slice %1 {offsets = [2, 0], sizes = [1, 896], strides = [1, 1]} : vector<9x896xf32> to vector<1x896xf32>
    %299 = arith.mulf %297, %298 : vector<1x896xf32>
    %300 = arith.addf %293, %299 : vector<1x896xf32>
    %c0_i32_168 = arith.constant 0 : i32
    %301 = arith.addi %c4_i32, %c0_i32_168 : i32
    %c0_169 = arith.constant 0 : index
    %c2_170 = arith.constant 2 : index
    %302 = arith.index_cast %301 : i32 to index
    %c0_171 = arith.constant 0 : index
    %303 = vector.load %arg1[%c0_169, %c2_170, %302, %c0_171] : memref<1x4x8x1024xf32, #tpu.memory_space<vmem>>, vector<1x1x1x896xf32>
    %304 = vector.shape_cast %303 : vector<1x1x1x896xf32> to vector<1x896xf32>
    %305 = vector.extract_strided_slice %1 {offsets = [3, 0], sizes = [1, 896], strides = [1, 1]} : vector<9x896xf32> to vector<1x896xf32>
    %306 = arith.mulf %304, %305 : vector<1x896xf32>
    %307 = arith.addf %300, %306 : vector<1x896xf32>
    %c0_i32_172 = arith.constant 0 : i32
    %308 = arith.addi %c4_i32, %c0_i32_172 : i32
    %c0_173 = arith.constant 0 : index
    %c3_174 = arith.constant 3 : index
    %309 = arith.index_cast %308 : i32 to index
    %c0_175 = arith.constant 0 : index
    %310 = vector.load %arg1[%c0_173, %c3_174, %309, %c0_175] : memref<1x4x8x1024xf32, #tpu.memory_space<vmem>>, vector<1x1x1x896xf32>
    %311 = vector.shape_cast %310 : vector<1x1x1x896xf32> to vector<1x896xf32>
    %312 = vector.extract_strided_slice %1 {offsets = [4, 0], sizes = [1, 896], strides = [1, 1]} : vector<9x896xf32> to vector<1x896xf32>
    %313 = arith.mulf %311, %312 : vector<1x896xf32>
    %314 = arith.addf %307, %313 : vector<1x896xf32>
    %c0_i32_176 = arith.constant 0 : i32
    %315 = arith.addi %c4_i32, %c0_i32_176 : i32
    %c0_177 = arith.constant 0 : index
    %c2_178 = arith.constant 2 : index
    %316 = arith.index_cast %315 : i32 to index
    %c128_179 = arith.constant 128 : index
    %317 = vector.load %arg1[%c0_177, %c2_178, %316, %c128_179] : memref<1x4x8x1024xf32, #tpu.memory_space<vmem>>, vector<1x1x1x896xf32>
    %318 = vector.shape_cast %317 : vector<1x1x1x896xf32> to vector<1x896xf32>
    %319 = vector.extract_strided_slice %1 {offsets = [5, 0], sizes = [1, 896], strides = [1, 1]} : vector<9x896xf32> to vector<1x896xf32>
    %320 = arith.mulf %318, %319 : vector<1x896xf32>
    %321 = arith.addf %314, %320 : vector<1x896xf32>
    %c1_i32_180 = arith.constant 1 : i32
    %322 = arith.addi %c4_i32, %c1_i32_180 : i32
    %c0_181 = arith.constant 0 : index
    %c0_182 = arith.constant 0 : index
    %323 = arith.index_cast %322 : i32 to index
    %c0_183 = arith.constant 0 : index
    %324 = vector.load %arg1[%c0_181, %c0_182, %323, %c0_183] : memref<1x4x8x1024xf32, #tpu.memory_space<vmem>>, vector<1x1x1x896xf32>
    %325 = vector.shape_cast %324 : vector<1x1x1x896xf32> to vector<1x896xf32>
    %326 = vector.extract_strided_slice %1 {offsets = [6, 0], sizes = [1, 896], strides = [1, 1]} : vector<9x896xf32> to vector<1x896xf32>
    %327 = arith.mulf %325, %326 : vector<1x896xf32>
    %328 = arith.addf %321, %327 : vector<1x896xf32>
    %c1_i32_184 = arith.constant 1 : i32
    %329 = arith.addi %c4_i32, %c1_i32_184 : i32
    %c0_185 = arith.constant 0 : index
    %c1_186 = arith.constant 1 : index
    %330 = arith.index_cast %329 : i32 to index
    %c0_187 = arith.constant 0 : index
    %331 = vector.load %arg1[%c0_185, %c1_186, %330, %c0_187] : memref<1x4x8x1024xf32, #tpu.memory_space<vmem>>, vector<1x1x1x896xf32>
    %332 = vector.shape_cast %331 : vector<1x1x1x896xf32> to vector<1x896xf32>
    %333 = vector.extract_strided_slice %1 {offsets = [7, 0], sizes = [1, 896], strides = [1, 1]} : vector<9x896xf32> to vector<1x896xf32>
    %334 = arith.mulf %332, %333 : vector<1x896xf32>
    %335 = arith.addf %328, %334 : vector<1x896xf32>
    %c1_i32_188 = arith.constant 1 : i32
    %336 = arith.addi %c4_i32, %c1_i32_188 : i32
    %c0_189 = arith.constant 0 : index
    %c0_190 = arith.constant 0 : index
    %337 = arith.index_cast %336 : i32 to index
    %c128_191 = arith.constant 128 : index
    %338 = vector.load %arg1[%c0_189, %c0_190, %337, %c128_191] : memref<1x4x8x1024xf32, #tpu.memory_space<vmem>>, vector<1x1x1x896xf32>
    %339 = vector.shape_cast %338 : vector<1x1x1x896xf32> to vector<1x896xf32>
    %340 = vector.extract_strided_slice %1 {offsets = [8, 0], sizes = [1, 896], strides = [1, 1]} : vector<9x896xf32> to vector<1x896xf32>
    %341 = arith.mulf %339, %340 : vector<1x896xf32>
    %342 = arith.addf %335, %341 : vector<1x896xf32>
    %cst_192 = arith.constant 0.000000e+00 : f32
    %343 = vector.broadcast %cst_192 : f32 to vector<1x896xf32>
    %344 = arith.maximumf %342, %343 : vector<1x896xf32>
    %c0_193 = arith.constant 0 : index
    %345 = arith.index_cast %c4_i32 : i32 to index
    %c0_194 = arith.constant 0 : index
    %346 = vector.load %arg4[%c0_193, %345, %c0_194] : memref<1x7x896xf32, #tpu.memory_space<vmem>>, vector<1x1x896xf32>
    %347 = vector.shape_cast %346 : vector<1x1x896xf32> to vector<1x896xf32>
    %348 = vector.shape_cast %344 : vector<1x896xf32> to vector<1x1x896xf32>
    tpu.vector_store %arg4[%c0_193, %345, %c0_194], %348 {strides = array<i32>} : memref<1x7x896xf32, #tpu.memory_space<vmem>>, vector<1x1x896xf32>,
    %c5_i32 = arith.constant 5 : i32
    %c0_i32_195 = arith.constant 0 : i32
    %349 = arith.addi %c5_i32, %c0_i32_195 : i32
    %c0_196 = arith.constant 0 : index
    %c0_197 = arith.constant 0 : index
    %350 = arith.index_cast %349 : i32 to index
    %c0_198 = arith.constant 0 : index
    %351 = vector.load %arg1[%c0_196, %c0_197, %350, %c0_198] : memref<1x4x8x1024xf32, #tpu.memory_space<vmem>>, vector<1x1x1x896xf32>
    %352 = vector.shape_cast %351 : vector<1x1x1x896xf32> to vector<1x896xf32>
    %353 = vector.extract_strided_slice %1 {offsets = [0, 0], sizes = [1, 896], strides = [1, 1]} : vector<9x896xf32> to vector<1x896xf32>
    %354 = arith.mulf %352, %353 : vector<1x896xf32>
    %355 = arith.addf %3, %354 : vector<1x896xf32>
    %c0_i32_199 = arith.constant 0 : i32
    %356 = arith.addi %c5_i32, %c0_i32_199 : i32
    %c0_200 = arith.constant 0 : index
    %c1_201 = arith.constant 1 : index
    %357 = arith.index_cast %356 : i32 to index
    %c0_202 = arith.constant 0 : index
    %358 = vector.load %arg1[%c0_200, %c1_201, %357, %c0_202] : memref<1x4x8x1024xf32, #tpu.memory_space<vmem>>, vector<1x1x1x896xf32>
    %359 = vector.shape_cast %358 : vector<1x1x1x896xf32> to vector<1x896xf32>
    %360 = vector.extract_strided_slice %1 {offsets = [1, 0], sizes = [1, 896], strides = [1, 1]} : vector<9x896xf32> to vector<1x896xf32>
    %361 = arith.mulf %359, %360 : vector<1x896xf32>
    %362 = arith.addf %355, %361 : vector<1x896xf32>
    %c0_i32_203 = arith.constant 0 : i32
    %363 = arith.addi %c5_i32, %c0_i32_203 : i32
    %c0_204 = arith.constant 0 : index
    %c0_205 = arith.constant 0 : index
    %364 = arith.index_cast %363 : i32 to index
    %c128_206 = arith.constant 128 : index
    %365 = vector.load %arg1[%c0_204, %c0_205, %364, %c128_206] : memref<1x4x8x1024xf32, #tpu.memory_space<vmem>>, vector<1x1x1x896xf32>
    %366 = vector.shape_cast %365 : vector<1x1x1x896xf32> to vector<1x896xf32>
    %367 = vector.extract_strided_slice %1 {offsets = [2, 0], sizes = [1, 896], strides = [1, 1]} : vector<9x896xf32> to vector<1x896xf32>
    %368 = arith.mulf %366, %367 : vector<1x896xf32>
    %369 = arith.addf %362, %368 : vector<1x896xf32>
    %c0_i32_207 = arith.constant 0 : i32
    %370 = arith.addi %c5_i32, %c0_i32_207 : i32
    %c0_208 = arith.constant 0 : index
    %c2_209 = arith.constant 2 : index
    %371 = arith.index_cast %370 : i32 to index
    %c0_210 = arith.constant 0 : index
    %372 = vector.load %arg1[%c0_208, %c2_209, %371, %c0_210] : memref<1x4x8x1024xf32, #tpu.memory_space<vmem>>, vector<1x1x1x896xf32>
    %373 = vector.shape_cast %372 : vector<1x1x1x896xf32> to vector<1x896xf32>
    %374 = vector.extract_strided_slice %1 {offsets = [3, 0], sizes = [1, 896], strides = [1, 1]} : vector<9x896xf32> to vector<1x896xf32>
    %375 = arith.mulf %373, %374 : vector<1x896xf32>
    %376 = arith.addf %369, %375 : vector<1x896xf32>
    %c0_i32_211 = arith.constant 0 : i32
    %377 = arith.addi %c5_i32, %c0_i32_211 : i32
    %c0_212 = arith.constant 0 : index
    %c3_213 = arith.constant 3 : index
    %378 = arith.index_cast %377 : i32 to index
    %c0_214 = arith.constant 0 : index
    %379 = vector.load %arg1[%c0_212, %c3_213, %378, %c0_214] : memref<1x4x8x1024xf32, #tpu.memory_space<vmem>>, vector<1x1x1x896xf32>
    %380 = vector.shape_cast %379 : vector<1x1x1x896xf32> to vector<1x896xf32>
    %381 = vector.extract_strided_slice %1 {offsets = [4, 0], sizes = [1, 896], strides = [1, 1]} : vector<9x896xf32> to vector<1x896xf32>
    %382 = arith.mulf %380, %381 : vector<1x896xf32>
    %383 = arith.addf %376, %382 : vector<1x896xf32>
    %c0_i32_215 = arith.constant 0 : i32
    %384 = arith.addi %c5_i32, %c0_i32_215 : i32
    %c0_216 = arith.constant 0 : index
    %c2_217 = arith.constant 2 : index
    %385 = arith.index_cast %384 : i32 to index
    %c128_218 = arith.constant 128 : index
    %386 = vector.load %arg1[%c0_216, %c2_217, %385, %c128_218] : memref<1x4x8x1024xf32, #tpu.memory_space<vmem>>, vector<1x1x1x896xf32>
    %387 = vector.shape_cast %386 : vector<1x1x1x896xf32> to vector<1x896xf32>
    %388 = vector.extract_strided_slice %1 {offsets = [5, 0], sizes = [1, 896], strides = [1, 1]} : vector<9x896xf32> to vector<1x896xf32>
    %389 = arith.mulf %387, %388 : vector<1x896xf32>
    %390 = arith.addf %383, %389 : vector<1x896xf32>
    %c1_i32_219 = arith.constant 1 : i32
    %391 = arith.addi %c5_i32, %c1_i32_219 : i32
    %c0_220 = arith.constant 0 : index
    %c0_221 = arith.constant 0 : index
    %392 = arith.index_cast %391 : i32 to index
    %c0_222 = arith.constant 0 : index
    %393 = vector.load %arg1[%c0_220, %c0_221, %392, %c0_222] : memref<1x4x8x1024xf32, #tpu.memory_space<vmem>>, vector<1x1x1x896xf32>
    %394 = vector.shape_cast %393 : vector<1x1x1x896xf32> to vector<1x896xf32>
    %395 = vector.extract_strided_slice %1 {offsets = [6, 0], sizes = [1, 896], strides = [1, 1]} : vector<9x896xf32> to vector<1x896xf32>
    %396 = arith.mulf %394, %395 : vector<1x896xf32>
    %397 = arith.addf %390, %396 : vector<1x896xf32>
    %c1_i32_223 = arith.constant 1 : i32
    %398 = arith.addi %c5_i32, %c1_i32_223 : i32
    %c0_224 = arith.constant 0 : index
    %c1_225 = arith.constant 1 : index
    %399 = arith.index_cast %398 : i32 to index
    %c0_226 = arith.constant 0 : index
    %400 = vector.load %arg1[%c0_224, %c1_225, %399, %c0_226] : memref<1x4x8x1024xf32, #tpu.memory_space<vmem>>, vector<1x1x1x896xf32>
    %401 = vector.shape_cast %400 : vector<1x1x1x896xf32> to vector<1x896xf32>
    %402 = vector.extract_strided_slice %1 {offsets = [7, 0], sizes = [1, 896], strides = [1, 1]} : vector<9x896xf32> to vector<1x896xf32>
    %403 = arith.mulf %401, %402 : vector<1x896xf32>
    %404 = arith.addf %397, %403 : vector<1x896xf32>
    %c1_i32_227 = arith.constant 1 : i32
    %405 = arith.addi %c5_i32, %c1_i32_227 : i32
    %c0_228 = arith.constant 0 : index
    %c0_229 = arith.constant 0 : index
    %406 = arith.index_cast %405 : i32 to index
    %c128_230 = arith.constant 128 : index
    %407 = vector.load %arg1[%c0_228, %c0_229, %406, %c128_230] : memref<1x4x8x1024xf32, #tpu.memory_space<vmem>>, vector<1x1x1x896xf32>
    %408 = vector.shape_cast %407 : vector<1x1x1x896xf32> to vector<1x896xf32>
    %409 = vector.extract_strided_slice %1 {offsets = [8, 0], sizes = [1, 896], strides = [1, 1]} : vector<9x896xf32> to vector<1x896xf32>
    %410 = arith.mulf %408, %409 : vector<1x896xf32>
    %411 = arith.addf %404, %410 : vector<1x896xf32>
    %cst_231 = arith.constant 0.000000e+00 : f32
    %412 = vector.broadcast %cst_231 : f32 to vector<1x896xf32>
    %413 = arith.maximumf %411, %412 : vector<1x896xf32>
    %c0_232 = arith.constant 0 : index
    %414 = arith.index_cast %c5_i32 : i32 to index
    %c0_233 = arith.constant 0 : index
    %415 = vector.load %arg4[%c0_232, %414, %c0_233] : memref<1x7x896xf32, #tpu.memory_space<vmem>>, vector<1x1x896xf32>
    %416 = vector.shape_cast %415 : vector<1x1x896xf32> to vector<1x896xf32>
    %417 = vector.shape_cast %413 : vector<1x896xf32> to vector<1x1x896xf32>
    tpu.vector_store %arg4[%c0_232, %414, %c0_233], %417 {strides = array<i32>} : memref<1x7x896xf32, #tpu.memory_space<vmem>>, vector<1x1x896xf32>,
    %c6_i32 = arith.constant 6 : i32
    %c0_i32_234 = arith.constant 0 : i32
    %418 = arith.addi %c6_i32, %c0_i32_234 : i32
    %c0_235 = arith.constant 0 : index
    %c0_236 = arith.constant 0 : index
    %419 = arith.index_cast %418 : i32 to index
    %c0_237 = arith.constant 0 : index
    %420 = vector.load %arg1[%c0_235, %c0_236, %419, %c0_237] : memref<1x4x8x1024xf32, #tpu.memory_space<vmem>>, vector<1x1x1x896xf32>
    %421 = vector.shape_cast %420 : vector<1x1x1x896xf32> to vector<1x896xf32>
    %422 = vector.extract_strided_slice %1 {offsets = [0, 0], sizes = [1, 896], strides = [1, 1]} : vector<9x896xf32> to vector<1x896xf32>
    %423 = arith.mulf %421, %422 : vector<1x896xf32>
    %424 = arith.addf %3, %423 : vector<1x896xf32>
    %c0_i32_238 = arith.constant 0 : i32
    %425 = arith.addi %c6_i32, %c0_i32_238 : i32
    %c0_239 = arith.constant 0 : index
    %c1_240 = arith.constant 1 : index
    %426 = arith.index_cast %425 : i32 to index
    %c0_241 = arith.constant 0 : index
    %427 = vector.load %arg1[%c0_239, %c1_240, %426, %c0_241] : memref<1x4x8x1024xf32, #tpu.memory_space<vmem>>, vector<1x1x1x896xf32>
    %428 = vector.shape_cast %427 : vector<1x1x1x896xf32> to vector<1x896xf32>
    %429 = vector.extract_strided_slice %1 {offsets = [1, 0], sizes = [1, 896], strides = [1, 1]} : vector<9x896xf32> to vector<1x896xf32>
    %430 = arith.mulf %428, %429 : vector<1x896xf32>
    %431 = arith.addf %424, %430 : vector<1x896xf32>
    %c0_i32_242 = arith.constant 0 : i32
    %432 = arith.addi %c6_i32, %c0_i32_242 : i32
    %c0_243 = arith.constant 0 : index
    %c0_244 = arith.constant 0 : index
    %433 = arith.index_cast %432 : i32 to index
    %c128_245 = arith.constant 128 : index
    %434 = vector.load %arg1[%c0_243, %c0_244, %433, %c128_245] : memref<1x4x8x1024xf32, #tpu.memory_space<vmem>>, vector<1x1x1x896xf32>
    %435 = vector.shape_cast %434 : vector<1x1x1x896xf32> to vector<1x896xf32>
    %436 = vector.extract_strided_slice %1 {offsets = [2, 0], sizes = [1, 896], strides = [1, 1]} : vector<9x896xf32> to vector<1x896xf32>
    %437 = arith.mulf %435, %436 : vector<1x896xf32>
    %438 = arith.addf %431, %437 : vector<1x896xf32>
    %c0_i32_246 = arith.constant 0 : i32
    %439 = arith.addi %c6_i32, %c0_i32_246 : i32
    %c0_247 = arith.constant 0 : index
    %c2_248 = arith.constant 2 : index
    %440 = arith.index_cast %439 : i32 to index
    %c0_249 = arith.constant 0 : index
    %441 = vector.load %arg1[%c0_247, %c2_248, %440, %c0_249] : memref<1x4x8x1024xf32, #tpu.memory_space<vmem>>, vector<1x1x1x896xf32>
    %442 = vector.shape_cast %441 : vector<1x1x1x896xf32> to vector<1x896xf32>
    %443 = vector.extract_strided_slice %1 {offsets = [3, 0], sizes = [1, 896], strides = [1, 1]} : vector<9x896xf32> to vector<1x896xf32>
    %444 = arith.mulf %442, %443 : vector<1x896xf32>
    %445 = arith.addf %438, %444 : vector<1x896xf32>
    %c0_i32_250 = arith.constant 0 : i32
    %446 = arith.addi %c6_i32, %c0_i32_250 : i32
    %c0_251 = arith.constant 0 : index
    %c3_252 = arith.constant 3 : index
    %447 = arith.index_cast %446 : i32 to index
    %c0_253 = arith.constant 0 : index
    %448 = vector.load %arg1[%c0_251, %c3_252, %447, %c0_253] : memref<1x4x8x1024xf32, #tpu.memory_space<vmem>>, vector<1x1x1x896xf32>
    %449 = vector.shape_cast %448 : vector<1x1x1x896xf32> to vector<1x896xf32>
    %450 = vector.extract_strided_slice %1 {offsets = [4, 0], sizes = [1, 896], strides = [1, 1]} : vector<9x896xf32> to vector<1x896xf32>
    %451 = arith.mulf %449, %450 : vector<1x896xf32>
    %452 = arith.addf %445, %451 : vector<1x896xf32>
    %c0_i32_254 = arith.constant 0 : i32
    %453 = arith.addi %c6_i32, %c0_i32_254 : i32
    %c0_255 = arith.constant 0 : index
    %c2_256 = arith.constant 2 : index
    %454 = arith.index_cast %453 : i32 to index
    %c128_257 = arith.constant 128 : index
    %455 = vector.load %arg1[%c0_255, %c2_256, %454, %c128_257] : memref<1x4x8x1024xf32, #tpu.memory_space<vmem>>, vector<1x1x1x896xf32>
    %456 = vector.shape_cast %455 : vector<1x1x1x896xf32> to vector<1x896xf32>
    %457 = vector.extract_strided_slice %1 {offsets = [5, 0], sizes = [1, 896], strides = [1, 1]} : vector<9x896xf32> to vector<1x896xf32>
    %458 = arith.mulf %456, %457 : vector<1x896xf32>
    %459 = arith.addf %452, %458 : vector<1x896xf32>
    %c1_i32_258 = arith.constant 1 : i32
    %460 = arith.addi %c6_i32, %c1_i32_258 : i32
    %c0_259 = arith.constant 0 : index
    %c0_260 = arith.constant 0 : index
    %461 = arith.index_cast %460 : i32 to index
    %c0_261 = arith.constant 0 : index
    %462 = vector.load %arg1[%c0_259, %c0_260, %461, %c0_261] : memref<1x4x8x1024xf32, #tpu.memory_space<vmem>>, vector<1x1x1x896xf32>
    %463 = vector.shape_cast %462 : vector<1x1x1x896xf32> to vector<1x896xf32>
    %464 = vector.extract_strided_slice %1 {offsets = [6, 0], sizes = [1, 896], strides = [1, 1]} : vector<9x896xf32> to vector<1x896xf32>
    %465 = arith.mulf %463, %464 : vector<1x896xf32>
    %466 = arith.addf %459, %465 : vector<1x896xf32>
    %c1_i32_262 = arith.constant 1 : i32
    %467 = arith.addi %c6_i32, %c1_i32_262 : i32
    %c0_263 = arith.constant 0 : index
    %c1_264 = arith.constant 1 : index
    %468 = arith.index_cast %467 : i32 to index
    %c0_265 = arith.constant 0 : index
    %469 = vector.load %arg1[%c0_263, %c1_264, %468, %c0_265] : memref<1x4x8x1024xf32, #tpu.memory_space<vmem>>, vector<1x1x1x896xf32>
    %470 = vector.shape_cast %469 : vector<1x1x1x896xf32> to vector<1x896xf32>
    %471 = vector.extract_strided_slice %1 {offsets = [7, 0], sizes = [1, 896], strides = [1, 1]} : vector<9x896xf32> to vector<1x896xf32>
    %472 = arith.mulf %470, %471 : vector<1x896xf32>
    %473 = arith.addf %466, %472 : vector<1x896xf32>
    %c1_i32_266 = arith.constant 1 : i32
    %474 = arith.addi %c6_i32, %c1_i32_266 : i32
    %c0_267 = arith.constant 0 : index
    %c0_268 = arith.constant 0 : index
    %475 = arith.index_cast %474 : i32 to index
    %c128_269 = arith.constant 128 : index
    %476 = vector.load %arg1[%c0_267, %c0_268, %475, %c128_269] : memref<1x4x8x1024xf32, #tpu.memory_space<vmem>>, vector<1x1x1x896xf32>
    %477 = vector.shape_cast %476 : vector<1x1x1x896xf32> to vector<1x896xf32>
    %478 = vector.extract_strided_slice %1 {offsets = [8, 0], sizes = [1, 896], strides = [1, 1]} : vector<9x896xf32> to vector<1x896xf32>
    %479 = arith.mulf %477, %478 : vector<1x896xf32>
    %480 = arith.addf %473, %479 : vector<1x896xf32>
    %cst_270 = arith.constant 0.000000e+00 : f32
    %481 = vector.broadcast %cst_270 : f32 to vector<1x896xf32>
    %482 = arith.maximumf %480, %481 : vector<1x896xf32>
    %c0_271 = arith.constant 0 : index
    %483 = arith.index_cast %c6_i32 : i32 to index
    %c0_272 = arith.constant 0 : index
    %484 = vector.load %arg4[%c0_271, %483, %c0_272] : memref<1x7x896xf32, #tpu.memory_space<vmem>>, vector<1x1x896xf32>
    %485 = vector.shape_cast %484 : vector<1x1x896xf32> to vector<1x896xf32>
    %486 = vector.shape_cast %482 : vector<1x896xf32> to vector<1x1x896xf32>
    tpu.vector_store %arg4[%c0_271, %483, %c0_272], %486 {strides = array<i32>} : memref<1x7x896xf32, #tpu.memory_space<vmem>>, vector<1x1x896xf32>,
    %c7_i32 = arith.constant 7 : i32
    return
  }
  func.func @transform_0(%arg0: i32) -> (i32, i32, i32, i32) {
    %c0_i32 = arith.constant 0 : i32
    %c0_i32_0 = arith.constant 0 : i32
    %c0_i32_1 = arith.constant 0 : i32
    %c0_i32_2 = arith.constant 0 : i32
    return %arg0, %c0_i32, %c0_i32_0, %c0_i32_1 : i32, i32, i32, i32
  }
  func.func @transform_1(%arg0: i32) -> (i32, i32, i32) {
    %c0_i32 = arith.constant 0 : i32
    %c0_i32_0 = arith.constant 0 : i32
    %c0_i32_1 = arith.constant 0 : i32
    return %arg0, %c0_i32, %c0_i32_0 : i32, i32, i32
  }
  func.func @transform_2(%arg0: i32) -> (i32, i32, i32) {
    %c0_i32 = arith.constant 0 : i32
    %c0_i32_0 = arith.constant 0 : i32
    %c0_i32_1 = arith.constant 0 : i32
    return %arg0, %c0_i32, %c0_i32_0 : i32, i32, i32
  }
  func.func @transform_3(%arg0: i32) -> (i32, i32, i32) {
    %c0_i32 = arith.constant 0 : i32
    %c0_i32_0 = arith.constant 0 : i32
    %c0_i32_1 = arith.constant 0 : i32
    return %arg0, %c0_i32, %c0_i32_0 : i32, i32, i32
  }
}

</mosaic_0001>

<llo_original>
// kernel: patches_block_forward.1
$region0: #{patches_block_forward.1}
  #allocation0 [shape = 'u32[]', space=smem, size = 0x4, offset = 0x4, fixed_abs, tag = 'smem constant byte address 0x4 - core index']
  #allocation1 [shape = 'u32[144,128]{1,0:T(1,128)}', space=vmem, size = 0x12000, scoped, tag = 'internal scratch']
  %s0 = inlined_call_operand.vmem [shape: f32[2,4,8,1024], index: 0, kind: input, shape index: {}]
  %s1 = inlined_call_operand.vmem [shape: f32[2,9,896], index: 1, kind: input, shape index: {}]
  %s2 = inlined_call_operand.vmem [shape: f32[2,1,896], index: 2, kind: input, shape index: {}]
  %s3 = inlined_call_operand.vmem [shape: f32[2,7,896], index: 3, kind: output, shape index: {}]
  %s4 = sld [smem:[#allocation0]]
  $region45: #{patches_block_forward.1} parent=0
    _
  %s6 = ssub.s32 1, %s4
  %s7 = scalar_select 0, %s6, %s4
  loop: start=0, step=1, limit=4
  $region2: #{patches_block_forward.1} parent=0 // loop_pre_header
    _
  $region3: #{patches_block_forward.1} parent=0 // loop_header
    %s9 = sphi 0, %s13
    %p10 = scmp.ge.s32.totalorder %s9, 4
    %s19 = sphi 0, %s21
    %s22 = sphi 0, %s19
    %s23 = sphi 0, %s22
    %s39 = sphi 0, %s23
    %s45 = sphi 0, %s47
    %s48 = sphi 0, %s45
    %s49 = sphi 0, %s48
    %s65 = sphi 0, %s49
    %s71 = sphi 0, %s73
    %s74 = sphi 0, %s71
    %s75 = sphi 0, %s74
    %s91 = sphi 0, %s75
    %s97 = sphi 0, %s99
    %s100 = sphi 0, %s97
    %s101 = sphi 0, %s100
    %s117 = sphi 0, %s101
  $region4: #{patches_block_forward.1} parent=0 // loop_header_branch
    %12 = sbr.rel (%p10) target = $region8
  $region5: #{patches_block_forward.1} parent=0 // loop_body
    %s14 = ssub.s32 %s9, 1
    %s15 = ssub.s32 %s9, 2
    %s16 = sadd.s32 %s9, 1
    %s17 = ssub.s32 %s9, %s16
    %p18 = scmp.eq.s32.totalorder %s17, 0
    %s20 = sadd.s32 %s19, 1
    %s21 = scalar_select %p18, %s19, %s20
    %p24 = pneg %p18
    %p25 = scmp.eq.s32.totalorder %s9, 1
    %p26 = por %p24, %p25
    %p27 = scmp.ne.s32.totalorder %s19, %s22
    %p28 = scmp.eq.s32.totalorder %s9, 0
    %p29 = por %p27, %p28
    %p30 = scmp.ne.s32.totalorder %s19, %s22
    %p31 = scmp.eq.s32.totalorder %s14, 1
    %p32 = por %p30, %p31
    %p33 = scmp.ne.s32.totalorder %s22, %s23
    %p34 = scmp.eq.s32.totalorder %s14, 0
    %p35 = por %p33, %p34
    %p36 = scmp.ne.s32.totalorder %s22, %s23
    %p37 = scmp.eq.s32.totalorder %s15, 1
    %p38 = por %p36, %p37
    %p40 = scmp.ne.s32.totalorder %s23, %s39
    %p41 = scmp.eq.s32.totalorder %s15, 0
    %p42 = por %p40, %p41
    %s43 = ssub.s32 %s9, %s16
    %p44 = scmp.eq.s32.totalorder %s43, 0
    %s46 = sadd.s32 %s45, 1
    %s47 = scalar_select %p44, %s45, %s46
    %p50 = pneg %p44
    %p51 = scmp.eq.s32.totalorder %s9, 1
    %p52 = por %p50, %p51
    %p53 = scmp.ne.s32.totalorder %s45, %s48
    %p54 = scmp.eq.s32.totalorder %s9, 0
    %p55 = por %p53, %p54
    %p56 = scmp.ne.s32.totalorder %s45, %s48
    %p57 = scmp.eq.s32.totalorder %s14, 1
    %p58 = por %p56, %p57
    %p59 = scmp.ne.s32.totalorder %s48, %s49
    %p60 = scmp.eq.s32.totalorder %s14, 0
    %p61 = por %p59, %p60
    %p62 = scmp.ne.s32.totalorder %s48, %s49
    %p63 = scmp.eq.s32.totalorder %s15, 1
    %p64 = por %p62, %p63
    %p66 = scmp.ne.s32.totalorder %s49, %s65
    %p67 = scmp.eq.s32.totalorder %s15, 0
    %p68 = por %p66, %p67
    %s69 = ssub.s32 %s9, %s16
    %p70 = scmp.eq.s32.totalorder %s69, 0
    %s72 = sadd.s32 %s71, 1
    %s73 = scalar_select %p70, %s71, %s72
    %p76 = pneg %p70
    %p77 = scmp.eq.s32.totalorder %s9, 1
    %p78 = por %p76, %p77
    %p79 = scmp.ne.s32.totalorder %s71, %s74
    %p80 = scmp.eq.s32.totalorder %s9, 0
    %p81 = por %p79, %p80
    %p82 = scmp.ne.s32.totalorder %s71, %s74
    %p83 = scmp.eq.s32.totalorder %s14, 1
    %p84 = por %p82, %p83
    %p85 = scmp.ne.s32.totalorder %s74, %s75
    %p86 = scmp.eq.s32.totalorder %s14, 0
    %p87 = por %p85, %p86
    %p88 = scmp.ne.s32.totalorder %s74, %s75
    %p89 = scmp.eq.s32.totalorder %s15, 1
    %p90 = por %p88, %p89
    %p92 = scmp.ne.s32.totalorder %s75, %s91
    %p93 = scmp.eq.s32.totalorder %s15, 0
    %p94 = por %p92, %p93
    %s95 = ssub.s32 %s9, %s16
    %p96 = scmp.eq.s32.totalorder %s95, 0
    %s98 = sadd.s32 %s97, 1
    %s99 = scalar_select %p96, %s97, %s98
    %p102 = pneg %p96
    %p103 = scmp.eq.s32.totalorder %s9, 1
    %p104 = por %p102, %p103
    %p105 = scmp.ne.s32.totalorder %s97, %s100
    %p106 = scmp.eq.s32.totalorder %s9, 0
    %p107 = por %p105, %p106
    %p108 = scmp.ne.s32.totalorder %s97, %s100
    %p109 = scmp.eq.s32.totalorder %s14, 1
    %p110 = por %p108, %p109
    %p111 = scmp.ne.s32.totalorder %s100, %s101
    %p112 = scmp.eq.s32.totalorder %s14, 0
    %p113 = por %p111, %p112
    %p114 = scmp.ne.s32.totalorder %s100, %s101
    %p115 = scmp.eq.s32.totalorder %s15, 1
    %p116 = por %p114, %p115
    %p118 = scmp.ne.s32.totalorder %s101, %s117
    %p119 = scmp.eq.s32.totalorder %s15, 0
    %p120 = por %p118, %p119
    %p121 = scmp.le.s32.totalorder 1, %s9
    %p122 = scmp.lt.s32.totalorder %s9, 3
    %p123 = pnand %p121, %p122
    %p124 = pneg %p123
    // Predicated region
    $region9: #{patches_block_forward.1} parent=5 // pred_check
      _
    $region10: #{patches_block_forward.1} parent=5 // pred_check_branch
      %126 = sbr.rel (%p123) target = $region12
    $region11: #{patches_block_forward.1} parent=5 // pred_region
      %s127 = ssub.s32 %s9, 1
    $region12: #{patches_block_forward.1} parent=5 // pred_fallthru
      _
    %p128 = scmp.lt.s32.totalorder %s9, 2
    // Predicated region
    $region13: #{patches_block_forward.1} parent=5 // pred_check
      %p129 = pneg %p128
    $region14: #{patches_block_forward.1} parent=5 // pred_check_branch
      %131 = sbr.rel (%p129) target = $region16
    $region15: #{patches_block_forward.1} parent=5 // pred_region
      // Predicated region
      $region17: #{patches_block_forward.1} parent=15 // pred_check
        %p132 = pneg %p29
      $region18: #{patches_block_forward.1} parent=15 // pred_check_branch
        %134 = sbr.rel (%p132) target = $region20
      $region19: #{patches_block_forward.1} parent=15 // pred_region
        %p135 = scmp.lt.s32.totalorder %s9, 1
        %s136 = scalar_select %p135, %s9, 1
        %s137 = smul.addr %s136, 32
        %s138 = smul.addr %s137, 8
        %s139 = scalar_lea.vmem %s0, %s138
      $region20: #{patches_block_forward.1} parent=15 // pred_fallthru
        _
      // Predicated region
      $region21: #{patches_block_forward.1} parent=15 // pred_check
        %p140 = pneg %p55
      $region22: #{patches_block_forward.1} parent=15 // pred_check_branch
        %142 = sbr.rel (%p140) target = $region24
      $region23: #{patches_block_forward.1} parent=15 // pred_region
        %p143 = scmp.lt.s32.totalorder %s9, 1
        %s144 = scalar_select %p143, %s9, 1
        %s145 = smul.addr %s144, 14
        %s146 = smul.addr %s145, 8
        %s147 = scalar_lea.vmem %s1, %s146
      $region24: #{patches_block_forward.1} parent=15 // pred_fallthru
        _
      // Predicated region
      $region25: #{patches_block_forward.1} parent=15 // pred_check
        %p148 = pneg %p81
      $region26: #{patches_block_forward.1} parent=15 // pred_check_branch
        %150 = sbr.rel (%p148) target = $region28
      $region27: #{patches_block_forward.1} parent=15 // pred_region
        %p151 = scmp.lt.s32.totalorder %s9, 1
        %s152 = scalar_select %p151, %s9, 1
        %s153 = smul.addr %s152, 7
        %s154 = scalar_lea.vmem %s2, %s153
      $region28: #{patches_block_forward.1} parent=15 // pred_fallthru
        _
    $region16: #{patches_block_forward.1} parent=5 // pred_fallthru
      _
    %p155 = scmp.le.s32.totalorder 1, %s9
    %p156 = scmp.lt.s32.totalorder %s9, 3
    %p157 = pnand %p155, %p156
    %p158 = pneg %p157
    // Predicated region
    $region29: #{patches_block_forward.1} parent=5 // pred_check
      _
    $region30: #{patches_block_forward.1} parent=5 // pred_check_branch
      %160 = sbr.rel (%p157) target = $region32
    $region31: #{patches_block_forward.1} parent=5 // pred_region
      %s161 = ssub.s32 %s9, 1
      %p162 = scmp.lt.s32.totalorder %s14, 1
      %s163 = scalar_select %p162, %s14, 1
      %s164 = smul.addr %s163, 32
      %s165 = smul.addr %s164, 8
      %s166 = scalar_lea.vmem %s0, %s165
      %p167 = pneg %p35
      %p168 = pneg %p32
      %p169 = scmp.lt.s32.totalorder %s14, 1
      %s170 = scalar_select %p169, %s14, 1
      %s171 = smul.addr %s170, 14
      %s172 = smul.addr %s171, 8
      %s173 = scalar_lea.vmem %s1, %s172
      %p174 = pneg %p61
      %p175 = pneg %p58
      %p176 = scmp.lt.s32.totalorder %s14, 1
      %s177 = scalar_select %p176, %s14, 1
      %s178 = smul.addr %s177, 7
      %s179 = scalar_lea.vmem %s2, %s178
      %p180 = pneg %p87
      %p181 = pneg %p84
      %p182 = pneg %p113
      %p183 = pneg %p110
      %p184 = scmp.lt.s32.totalorder %s14, 1
      %s185 = scalar_select %p184, %s14, 1
      %s186 = smul.addr %s185, 7
      %s187 = smul.addr %s186, 8
      %s188 = scalar_lea.vmem %s3, %s187
      %p189 = scmp.lt.s32.totalorder %s14, 1
      %s190 = scalar_select %p189, %s14, 1
      %s191 = smul.addr %s190, 32
      %s192 = smul.addr %s191, 8
      %s193 = scalar_lea.vmem %s0, %s192
      %p194 = scmp.lt.s32.totalorder %s14, 1
      %s195 = scalar_select %p194, %s14, 1
      %s196 = smul.addr %s195, 14
      %s197 = smul.addr %s196, 8
      %s198 = scalar_lea.vmem %s1, %s197
      %p199 = scmp.lt.s32.totalorder %s14, 1
      %s200 = scalar_select %p199, %s14, 1
      %s201 = smul.addr %s200, 7
      %s202 = scalar_lea.vmem %s2, %s201
      %p203 = scmp.lt.s32.totalorder %s14, 1
      %s204 = scalar_select %p203, %s14, 1
      %s205 = smul.addr %s204, 7
      %s206 = smul.addr %s205, 8
      %s207 = scalar_lea.vmem %s3, %s206
      %v208 = vld [vmem:[%s198] sm:$0xff]
      %v209 = vld [vmem:[%s198 + $0x8] sm:$0xff]
      %v210 = vld [vmem:[%s198 + $0x10] sm:$0xff]
      %v211 = vld [vmem:[%s198 + $0x18] sm:$0xff]
      %v212 = vld [vmem:[%s198 + $0x20] sm:$0xff]
      %v213 = vld [vmem:[%s198 + $0x28] sm:$0xff]
      %v214 = vld [vmem:[%s198 + $0x30] sm:$0xff]
      %v215 = vld [vmem:[%s198 + $0x38] sm:$0x1]
      %v216 = vld [vmem:[%s198 + $0x40] sm:$0x1]
      %v217 = vld [vmem:[%s198 + $0x48] sm:$0x1]
      %v218 = vld [vmem:[%s198 + $0x50] sm:$0x1]
      %v219 = vld [vmem:[%s198 + $0x58] sm:$0x1]
      %v220 = vld [vmem:[%s198 + $0x60] sm:$0x1]
      %v221 = vld [vmem:[%s198 + $0x68] sm:$0x1]
      %v222 = vld [vmem:[%s202] sm:$0xff]
      %v223 = vld [vmem:[%s193] ss:$8 sm:$0xf]
      %v224 = vld [vmem:[%s193] ss:$8 sm:$0xf0]
      %v225 = vor.u32 %v223, %v224
      %v233 = vcombine.low %v208, %v209
      %v234 = vcombine.low %v210, %v211
      %v235 = vcombine.low %v212, %v213
      %v237 = vunpack.c.l.s4 1966171168
      %v238 = vunpack.c.0.s8 %v237
      %v239 = vlaneseq
      %v240 = vshrl.u32 %v239, 7
      %v241 = vsub.s32 %v238, %v240
      %v242 = vrot.slane %v233, %v241
      %v244 = vunpack.c.l.s4 1966171168
      %v245 = vunpack.c.0.s8 %v244
      %v246 = vlaneseq
      %v247 = vshrl.u32 %v246, 7
      %v248 = vsub.s32 %v245, %v247
      %v249 = vrot.slane %v234, %v248
      %v251 = vunpack.c.l.s4 1966171168
      %v252 = vunpack.c.0.s8 %v251
      %v253 = vlaneseq
      %v254 = vshrl.u32 %v253, 7
      %v255 = vsub.s32 %v252, %v254
      %v256 = vrot.slane %v235, %v255
      %v258 = vunpack.c.l.s4 1966171168
      %v259 = vunpack.c.0.s8 %v258
      %v260 = vlaneseq
      %v261 = vshrl.u32 %v260, 7
      %v262 = vsub.s32 %v259, %v261
      %v263 = vrot.slane %v214, %v262
      %v264 = vcombine.low %v242, %v249
      %v265 = vcombine.low %v256, %v263
      %v267 = vunpack.c.l.s4 1966171168
      %v268 = vunpack.c.0.s8 %v267
      %v269 = vlaneseq
      %v270 = vshrl.u32 %v269, 7
      %v271 = vsub.s32 %v268, %v270
      %v272 = vrot.slane %v264, %v271
      %v274 = vunpack.c.l.s4 1966171168
      %v275 = vunpack.c.0.s8 %v274
      %v276 = vlaneseq
      %v277 = vshrl.u32 %v276, 7
      %v278 = vsub.s32 %v275, %v277
      %v279 = vrot.slane %v265, %v278
      %v280 = vcombine.low %v272, %v279
      %v282 = vmul.f32 %v225, %v280
      %v283 = vadd.f32 %v222, %v282
      %s284 = scalar_lea.vmem %s193, 64
      %v285 = vld [vmem:[%s284] ss:$8 sm:$0xf]
      %v286 = vld [vmem:[%s284] ss:$8 sm:$0xf0]
      %v287 = vor.u32 %v285, %v286
      %v288 = vcombine.high %v242, %v249
      %v289 = vcombine.high %v256, %v263
      %v291 = vunpack.c.l.s4 1966171168
      %v292 = vunpack.c.0.s8 %v291
      %v293 = vlaneseq
      %v294 = vshrl.u32 %v293, 7
      %v295 = vsub.s32 %v292, %v294
      %v296 = vrot.slane %v288, %v295
      %v298 = vunpack.c.l.s4 1966171168
      %v299 = vunpack.c.0.s8 %v298
      %v300 = vlaneseq
      %v301 = vshrl.u32 %v300, 7
      %v302 = vsub.s32 %v299, %v301
      %v303 = vrot.slane %v289, %v302
      %v304 = vcombine.low %v296, %v303
      %v306 = vmul.f32 %v287, %v304
      %v307 = vadd.f32 %v283, %v306
      %s308 = scalar_lea.vmem %s193, 8
      %v309 = vld [vmem:[%s308] ss:$8 sm:$0xf]
      %v310 = vld [vmem:[%s308] ss:$8 sm:$0xf0]
      %v311 = vor.u32 %v309, %v310
      %v312 = vcombine.high %v272, %v279
      %v314 = vmul.f32 %v311, %v312
      %v315 = vadd.f32 %v307, %v314
      %s316 = scalar_lea.vmem %s193, 128
      %v317 = vld [vmem:[%s316] ss:$8 sm:$0xf]
      %v318 = vld [vmem:[%s316] ss:$8 sm:$0xf0]
      %v319 = vor.u32 %v317, %v318
      %v320 = vcombine.high %v296, %v303
      %v322 = vmul.f32 %v319, %v320
      %v323 = vadd.f32 %v315, %v322
      %s324 = scalar_lea.vmem %s193, 192
      %v325 = vld [vmem:[%s324] ss:$8 sm:$0xf]
      %v326 = vld [vmem:[%s324] ss:$8 sm:$0xf0]
      %v327 = vor.u32 %v325, %v326
      %v328 = vcombine.high %v208, %v209
      %v329 = vcombine.high %v210, %v211
      %v330 = vcombine.high %v212, %v213
      %v331 = vcombine.high %v214, %v214
      %v333 = vunpack.c.l.s4 1966171168
      %v334 = vunpack.c.0.s8 %v333
      %v335 = vlaneseq
      %v336 = vshrl.u32 %v335, 7
      %v337 = vsub.s32 %v334, %v336
      %v338 = vrot.slane %v328, %v337
      %v340 = vunpack.c.l.s4 1966171168
      %v341 = vunpack.c.0.s8 %v340
      %v342 = vlaneseq
      %v343 = vshrl.u32 %v342, 7
      %v344 = vsub.s32 %v341, %v343
      %v345 = vrot.slane %v329, %v344
      %v347 = vunpack.c.l.s4 1966171168
      %v348 = vunpack.c.0.s8 %v347
      %v349 = vlaneseq
      %v350 = vshrl.u32 %v349, 7
      %v351 = vsub.s32 %v348, %v350
      %v352 = vrot.slane %v330, %v351
      %v354 = vunpack.c.l.s4 1966171168
      %v355 = vunpack.c.0.s8 %v354
      %v356 = vlaneseq
      %v357 = vshrl.u32 %v356, 7
      %v358 = vsub.s32 %v355, %v357
      %v359 = vrot.slane %v331, %v358
      %v360 = vcombine.low %v338, %v345
      %v361 = vcombine.low %v352, %v359
      %v363 = vunpack.c.l.s4 1966171168
      %v364 = vunpack.c.0.s8 %v363
      %v365 = vlaneseq
      %v366 = vshrl.u32 %v365, 7
      %v367 = vsub.s32 %v364, %v366
      %v368 = vrot.slane %v360, %v367
      %v370 = vunpack.c.l.s4 1966171168
      %v371 = vunpack.c.0.s8 %v370
      %v372 = vlaneseq
      %v373 = vshrl.u32 %v372, 7
      %v374 = vsub.s32 %v371, %v373
      %v375 = vrot.slane %v361, %v374
      %v376 = vcombine.low %v368, %v375
      %v378 = vmul.f32 %v327, %v376
      %v379 = vadd.f32 %v323, %v378
      %s380 = scalar_lea.vmem %s316, 8
      %v381 = vld [vmem:[%s380] ss:$8 sm:$0xf]
      %v382 = vld [vmem:[%s380] ss:$8 sm:$0xf0]
      %v383 = vor.u32 %v381, %v382
      %v384 = vcombine.high %v338, %v345
      %v385 = vcombine.high %v352, %v359
      %v387 = vunpack.c.l.s4 1966171168
      %v388 = vunpack.c.0.s8 %v387
      %v389 = vlaneseq
      %v390 = vshrl.u32 %v389, 7
      %v391 = vsub.s32 %v388, %v390
      %v392 = vrot.slane %v384, %v391
      %v394 = vunpack.c.l.s4 1966171168
      %v395 = vunpack.c.0.s8 %v394
      %v396 = vlaneseq
      %v397 = vshrl.u32 %v396, 7
      %v398 = vsub.s32 %v395, %v397
      %v399 = vrot.slane %v385, %v398
      %v400 = vcombine.low %v392, %v399
      %v402 = vmul.f32 %v383, %v400
      %v403 = vadd.f32 %v379, %v402
      %s404 = scalar_lea.vmem %s193, 1
      %v405 = vld [vmem:[%s404] ss:$8 sm:$0xf]
      %v406 = vld [vmem:[%s404] ss:$8 sm:$0xf0]
      %v407 = vor.u32 %v405, %v406
      %v408 = vcombine.high %v368, %v375
      %v410 = vmul.f32 %v407, %v408
      %v411 = vadd.f32 %v403, %v410
      %s412 = scalar_lea.vmem %s284, 1
      %v413 = vld [vmem:[%s412] ss:$8 sm:$0xf]
      %v414 = vld [vmem:[%s412] ss:$8 sm:$0xf0]
      %v415 = vor.u32 %v413, %v414
      %v416 = vcombine.high %v392, %v399
      %v418 = vmul.f32 %v415, %v416
      %v419 = vadd.f32 %v411, %v418
      %s420 = scalar_lea.vmem %s193, 9
      %v421 = vld [vmem:[%s420] ss:$8 sm:$0xf]
      %v422 = vld [vmem:[%s420] ss:$8 sm:$0xf0]
      %v423 = vor.u32 %v421, %v422
      %v431 = vcombine.low %v215, %v216
      %v432 = vcombine.low %v217, %v218
      %v433 = vcombine.low %v219, %v220
      %v435 = vunpack.c.l.s4 1966171168
      %v436 = vunpack.c.0.s8 %v435
      %v437 = vlaneseq
      %v438 = vshrl.u32 %v437, 7
      %v439 = vsub.s32 %v436, %v438
      %v440 = vrot.slane %v431, %v439
      %v442 = vunpack.c.l.s4 1966171168
      %v443 = vunpack.c.0.s8 %v442
      %v444 = vlaneseq
      %v445 = vshrl.u32 %v444, 7
      %v446 = vsub.s32 %v443, %v445
      %v447 = vrot.slane %v432, %v446
      %v449 = vunpack.c.l.s4 1966171168
      %v450 = vunpack.c.0.s8 %v449
      %v451 = vlaneseq
      %v452 = vshrl.u32 %v451, 7
      %v453 = vsub.s32 %v450, %v452
      %v454 = vrot.slane %v433, %v453
      %v456 = vunpack.c.l.s4 1966171168
      %v457 = vunpack.c.0.s8 %v456
      %v458 = vlaneseq
      %v459 = vshrl.u32 %v458, 7
      %v460 = vsub.s32 %v457, %v459
      %v461 = vrot.slane %v221, %v460
      %v462 = vcombine.low %v440, %v447
      %v463 = vcombine.low %v454, %v461
      %v465 = vunpack.c.l.s4 1966171168
      %v466 = vunpack.c.0.s8 %v465
      %v467 = vlaneseq
      %v468 = vshrl.u32 %v467, 7
      %v469 = vsub.s32 %v466, %v468
      %v470 = vrot.slane %v462, %v469
      %v472 = vunpack.c.l.s4 1966171168
      %v473 = vunpack.c.0.s8 %v472
      %v474 = vlaneseq
      %v475 = vshrl.u32 %v474, 7
      %v476 = vsub.s32 %v473, %v475
      %v477 = vrot.slane %v463, %v476
      %v478 = vcombine.low %v470, %v477
      %v480 = vmul.f32 %v423, %v478
      %v481 = vadd.f32 %v419, %v480
      %v482 = vmax.f32 %v481, 0.0
      %v483 = vlaneseq
      %vm484 = vcmp.ge.s32.totalorder %v483, 0
      %vm485 = vcmp.lt.s32.totalorder %v483, 896
      %vm486 = vmand %vm484, %vm485
      %487 = vst.msk [vmem:[%s207] ss:$8 sm:$0xf] %vm486, %v482
      %488 = vst.msk [vmem:[%s207] ss:$8 sm:$0x70] %vm486, %v482
      %v489 = vld [vmem:[%s404] ss:$8 sm:$0xf]
      %v490 = vld [vmem:[%s404] ss:$8 sm:$0xf0]
      %v491 = vor.u32 %v489, %v490
      %v492 = vmul.f32 %v491, %v280
      %v493 = vadd.f32 %v222, %v492
      %v494 = vld [vmem:[%s412] ss:$8 sm:$0xf]
      %v495 = vld [vmem:[%s412] ss:$8 sm:$0xf0]
      %v496 = vor.u32 %v494, %v495
      %v497 = vmul.f32 %v496, %v304
      %v498 = vadd.f32 %v493, %v497
      %v499 = vld [vmem:[%s420] ss:$8 sm:$0xf]
      %v500 = vld [vmem:[%s420] ss:$8 sm:$0xf0]
      %v501 = vor.u32 %v499, %v500
      %v502 = vmul.f32 %v501, %v312
      %v503 = vadd.f32 %v498, %v502
      %s504 = scalar_lea.vmem %s316, 1
      %v505 = vld [vmem:[%s504] ss:$8 sm:$0xf]
      %v506 = vld [vmem:[%s504] ss:$8 sm:$0xf0]
      %v507 = vor.u32 %v505, %v506
      %v508 = vmul.f32 %v507, %v320
      %v509 = vadd.f32 %v503, %v508
      %s510 = scalar_lea.vmem %s324, 1
      %v511 = vld [vmem:[%s510] ss:$8 sm:$0xf]
      %v512 = vld [vmem:[%s510] ss:$8 sm:$0xf0]
      %v513 = vor.u32 %v511, %v512
      %v514 = vmul.f32 %v513, %v376
      %v515 = vadd.f32 %v509, %v514
      %s516 = scalar_lea.vmem %s316, 9
      %v517 = vld [vmem:[%s516] ss:$8 sm:$0xf]
      %v518 = vld [vmem:[%s516] ss:$8 sm:$0xf0]
      %v519 = vor.u32 %v517, %v518
      %v520 = vmul.f32 %v519, %v400
      %v521 = vadd.f32 %v515, %v520
      %s522 = scalar_lea.vmem %s193, 2
      %v523 = vld [vmem:[%s522] ss:$8 sm:$0xf]
      %v524 = vld [vmem:[%s522] ss:$8 sm:$0xf0]
      %v525 = vor.u32 %v523, %v524
      %v526 = vmul.f32 %v525, %v408
      %v527 = vadd.f32 %v521, %v526
      %s528 = scalar_lea.vmem %s284, 2
      %v529 = vld [vmem:[%s528] ss:$8 sm:$0xf]
      %v530 = vld [vmem:[%s528] ss:$8 sm:$0xf0]
      %v531 = vor.u32 %v529, %v530
      %v532 = vmul.f32 %v531, %v416
      %v533 = vadd.f32 %v527, %v532
      %s534 = scalar_lea.vmem %s193, 10
      %v535 = vld [vmem:[%s534] ss:$8 sm:$0xf]
      %v536 = vld [vmem:[%s534] ss:$8 sm:$0xf0]
      %v537 = vor.u32 %v535, %v536
      %v538 = vmul.f32 %v537, %v478
      %v539 = vadd.f32 %v533, %v538
      %v540 = vmax.f32 %v539, 0.0
      %s541 = scalar_lea.vmem %s207, 1
      %542 = vst.msk [vmem:[%s541] ss:$8 sm:$0xf] %vm486, %v540
      %543 = vst.msk [vmem:[%s541] ss:$8 sm:$0x70] %vm486, %v540
      %v544 = vld [vmem:[%s522] ss:$8 sm:$0xf]
      %v545 = vld [vmem:[%s522] ss:$8 sm:$0xf0]
      %v546 = vor.u32 %v544, %v545
      %v547 = vmul.f32 %v546, %v280
      %v548 = vadd.f32 %v222, %v547
      %v549 = vld [vmem:[%s528] ss:$8 sm:$0xf]
      %v550 = vld [vmem:[%s528] ss:$8 sm:$0xf0]
      %v551 = vor.u32 %v549, %v550
      %v552 = vmul.f32 %v551, %v304
      %v553 = vadd.f32 %v548, %v552
      %v554 = vld [vmem:[%s534] ss:$8 sm:$0xf]
      %v555 = vld [vmem:[%s534] ss:$8 sm:$0xf0]
      %v556 = vor.u32 %v554, %v555
      %v557 = vmul.f32 %v556, %v312
      %v558 = vadd.f32 %v553, %v557
      %s559 = scalar_lea.vmem %s316, 2
      %v560 = vld [vmem:[%s559] ss:$8 sm:$0xf]
      %v561 = vld [vmem:[%s559] ss:$8 sm:$0xf0]
      %v562 = vor.u32 %v560, %v561
      %v563 = vmul.f32 %v562, %v320
      %v564 = vadd.f32 %v558, %v563
      %s565 = scalar_lea.vmem %s324, 2
      %v566 = vld [vmem:[%s565] ss:$8 sm:$0xf]
      %v567 = vld [vmem:[%s565] ss:$8 sm:$0xf0]
      %v568 = vor.u32 %v566, %v567
      %v569 = vmul.f32 %v568, %v376
      %v570 = vadd.f32 %v564, %v569
      %s571 = scalar_lea.vmem %s316, 10
      %v572 = vld [vmem:[%s571] ss:$8 sm:$0xf]
      %v573 = vld [vmem:[%s571] ss:$8 sm:$0xf0]
      %v574 = vor.u32 %v572, %v573
      %v575 = vmul.f32 %v574, %v400
      %v576 = vadd.f32 %v570, %v575
      %s577 = scalar_lea.vmem %s193, 3
      %v578 = vld [vmem:[%s577] ss:$8 sm:$0xf]
      %v579 = vld [vmem:[%s577] ss:$8 sm:$0xf0]
      %v580 = vor.u32 %v578, %v579
      %v581 = vmul.f32 %v580, %v408
      %v582 = vadd.f32 %v576, %v581
      %s583 = scalar_lea.vmem %s284, 3
      %v584 = vld [vmem:[%s583] ss:$8 sm:$0xf]
      %v585 = vld [vmem:[%s583] ss:$8 sm:$0xf0]
      %v586 = vor.u32 %v584, %v585
      %v587 = vmul.f32 %v586, %v416
      %v588 = vadd.f32 %v582, %v587
      %s589 = scalar_lea.vmem %s193, 11
      %v590 = vld [vmem:[%s589] ss:$8 sm:$0xf]
      %v591 = vld [vmem:[%s589] ss:$8 sm:$0xf0]
      %v592 = vor.u32 %v590, %v591
      %v593 = vmul.f32 %v592, %v478
      %v594 = vadd.f32 %v588, %v593
      %v595 = vmax.f32 %v594, 0.0
      %s596 = scalar_lea.vmem %s207, 2
      %597 = vst.msk [vmem:[%s596] ss:$8 sm:$0xf] %vm486, %v595
      %598 = vst.msk [vmem:[%s596] ss:$8 sm:$0x70] %vm486, %v595
      %v599 = vld [vmem:[%s577] ss:$8 sm:$0xf]
      %v600 = vld [vmem:[%s577] ss:$8 sm:$0xf0]
      %v601 = vor.u32 %v599, %v600
      %v602 = vmul.f32 %v601, %v280
      %v603 = vadd.f32 %v222, %v602
      %v604 = vld [vmem:[%s583] ss:$8 sm:$0xf]
      %v605 = vld [vmem:[%s583] ss:$8 sm:$0xf0]
      %v606 = vor.u32 %v604, %v605
      %v607 = vmul.f32 %v606, %v304
      %v608 = vadd.f32 %v603, %v607
      %v609 = vld [vmem:[%s589] ss:$8 sm:$0xf]
      %v610 = vld [vmem:[%s589] ss:$8 sm:$0xf0]
      %v611 = vor.u32 %v609, %v610
      %v612 = vmul.f32 %v611, %v312
      %v613 = vadd.f32 %v608, %v612
      %s614 = scalar_lea.vmem %s316, 3
      %v615 = vld [vmem:[%s614] ss:$8 sm:$0xf]
      %v616 = vld [vmem:[%s614] ss:$8 sm:$0xf0]
      %v617 = vor.u32 %v615, %v616
      %v618 = vmul.f32 %v617, %v320
      %v619 = vadd.f32 %v613, %v618
      %s620 = scalar_lea.vmem %s324, 3
      %v621 = vld [vmem:[%s620] ss:$8 sm:$0xf]
      %v622 = vld [vmem:[%s620] ss:$8 sm:$0xf0]
      %v623 = vor.u32 %v621, %v622
      %v624 = vmul.f32 %v623, %v376
      %v625 = vadd.f32 %v619, %v624
      %s626 = scalar_lea.vmem %s316, 11
      %v627 = vld [vmem:[%s626] ss:$8 sm:$0xf]
      %v628 = vld [vmem:[%s626] ss:$8 sm:$0xf0]
      %v629 = vor.u32 %v627, %v628
      %v630 = vmul.f32 %v629, %v400
      %v631 = vadd.f32 %v625, %v630
      %s632 = scalar_lea.vmem %s193, 4
      %v633 = vld [vmem:[%s632] ss:$8 sm:$0xf]
      %v634 = vld [vmem:[%s632] ss:$8 sm:$0xf0]
      %v635 = vor.u32 %v633, %v634
      %v636 = vmul.f32 %v635, %v408
      %v637 = vadd.f32 %v631, %v636
      %s638 = scalar_lea.vmem %s284, 4
      %v639 = vld [vmem:[%s638] ss:$8 sm:$0xf]
      %v640 = vld [vmem:[%s638] ss:$8 sm:$0xf0]
      %v641 = vor.u32 %v639, %v640
      %v642 = vmul.f32 %v641, %v416
      %v643 = vadd.f32 %v637, %v642
      %s644 = scalar_lea.vmem %s193, 12
      %v645 = vld [vmem:[%s644] ss:$8 sm:$0xf]
      %v646 = vld [vmem:[%s644] ss:$8 sm:$0xf0]
      %v647 = vor.u32 %v645, %v646
      %v648 = vmul.f32 %v647, %v478
      %v649 = vadd.f32 %v643, %v648
      %v650 = vmax.f32 %v649, 0.0
      %s651 = scalar_lea.vmem %s207, 3
      %652 = vst.msk [vmem:[%s651] ss:$8 sm:$0xf] %vm486, %v650
      %653 = vst.msk [vmem:[%s651] ss:$8 sm:$0x70] %vm486, %v650
      %v654 = vld [vmem:[%s632] ss:$8 sm:$0xf]
      %v655 = vld [vmem:[%s632] ss:$8 sm:$0xf0]
      %v656 = vor.u32 %v654, %v655
      %v657 = vmul.f32 %v656, %v280
      %v658 = vadd.f32 %v222, %v657
      %v659 = vld [vmem:[%s638] ss:$8 sm:$0xf]
      %v660 = vld [vmem:[%s638] ss:$8 sm:$0xf0]
      %v661 = vor.u32 %v659, %v660
      %v662 = vmul.f32 %v661, %v304
      %v663 = vadd.f32 %v658, %v662
      %v664 = vld [vmem:[%s644] ss:$8 sm:$0xf]
      %v665 = vld [vmem:[%s644] ss:$8 sm:$0xf0]
      %v666 = vor.u32 %v664, %v665
      %v667 = vmul.f32 %v666, %v312
      %v668 = vadd.f32 %v663, %v667
      %s669 = scalar_lea.vmem %s316, 4
      %v670 = vld [vmem:[%s669] ss:$8 sm:$0xf]
      %v671 = vld [vmem:[%s669] ss:$8 sm:$0xf0]
      %v672 = vor.u32 %v670, %v671
      %v673 = vmul.f32 %v672, %v320
      %v674 = vadd.f32 %v668, %v673
      %s675 = scalar_lea.vmem %s324, 4
      %v676 = vld [vmem:[%s675] ss:$8 sm:$0xf]
      %v677 = vld [vmem:[%s675] ss:$8 sm:$0xf0]
      %v678 = vor.u32 %v676, %v677
      %v679 = vmul.f32 %v678, %v376
      %v680 = vadd.f32 %v674, %v679
      %s681 = scalar_lea.vmem %s316, 12
      %v682 = vld [vmem:[%s681] ss:$8 sm:$0xf]
      %v683 = vld [vmem:[%s681] ss:$8 sm:$0xf0]
      %v684 = vor.u32 %v682, %v683
      %v685 = vmul.f32 %v684, %v400
      %v686 = vadd.f32 %v680, %v685
      %s687 = scalar_lea.vmem %s193, 5
      %v688 = vld [vmem:[%s687] ss:$8 sm:$0xf]
      %v689 = vld [vmem:[%s687] ss:$8 sm:$0xf0]
      %v690 = vor.u32 %v688, %v689
      %v691 = vmul.f32 %v690, %v408
      %v692 = vadd.f32 %v686, %v691
      %s693 = scalar_lea.vmem %s284, 5
      %v694 = vld [vmem:[%s693] ss:$8 sm:$0xf]
      %v695 = vld [vmem:[%s693] ss:$8 sm:$0xf0]
      %v696 = vor.u32 %v694, %v695
      %v697 = vmul.f32 %v696, %v416
      %v698 = vadd.f32 %v692, %v697
      %s699 = scalar_lea.vmem %s193, 13
      %v700 = vld [vmem:[%s699] ss:$8 sm:$0xf]
      %v701 = vld [vmem:[%s699] ss:$8 sm:$0xf0]
      %v702 = vor.u32 %v700, %v701
      %v703 = vmul.f32 %v702, %v478
      %v704 = vadd.f32 %v698, %v703
      %v705 = vmax.f32 %v704, 0.0
      %s706 = scalar_lea.vmem %s207, 4
      %707 = vst.msk [vmem:[%s706] ss:$8 sm:$0xf] %vm486, %v705
      %708 = vst.msk [vmem:[%s706] ss:$8 sm:$0x70] %vm486, %v705
      %v709 = vld [vmem:[%s687] ss:$8 sm:$0xf]
      %v710 = vld [vmem:[%s687] ss:$8 sm:$0xf0]
      %v711 = vor.u32 %v709, %v710
      %v712 = vmul.f32 %v711, %v280
      %v713 = vadd.f32 %v222, %v712
      %v714 = vld [vmem:[%s693] ss:$8 sm:$0xf]
      %v715 = vld [vmem:[%s693] ss:$8 sm:$0xf0]
      %v716 = vor.u32 %v714, %v715
      %v717 = vmul.f32 %v716, %v304
      %v718 = vadd.f32 %v713, %v717
      %v719 = vld [vmem:[%s699] ss:$8 sm:$0xf]
      %v720 = vld [vmem:[%s699] ss:$8 sm:$0xf0]
      %v721 = vor.u32 %v719, %v720
      %v722 = vmul.f32 %v721, %v312
      %v723 = vadd.f32 %v718, %v722
      %s724 = scalar_lea.vmem %s316, 5
      %v725 = vld [vmem:[%s724] ss:$8 sm:$0xf]
      %v726 = vld [vmem:[%s724] ss:$8 sm:$0xf0]
      %v727 = vor.u32 %v725, %v726
      %v728 = vmul.f32 %v727, %v320
      %v729 = vadd.f32 %v723, %v728
      %s730 = scalar_lea.vmem %s324, 5
      %v731 = vld [vmem:[%s730] ss:$8 sm:$0xf]
      %v732 = vld [vmem:[%s730] ss:$8 sm:$0xf0]
      %v733 = vor.u32 %v731, %v732
      %v734 = vmul.f32 %v733, %v376
      %v735 = vadd.f32 %v729, %v734
      %s736 = scalar_lea.vmem %s316, 13
      %v737 = vld [vmem:[%s736] ss:$8 sm:$0xf]
      %v738 = vld [vmem:[%s736] ss:$8 sm:$0xf0]
      %v739 = vor.u32 %v737, %v738
      %v740 = vmul.f32 %v739, %v400
      %v741 = vadd.f32 %v735, %v740
      %s742 = scalar_lea.vmem %s193, 6
      %v743 = vld [vmem:[%s742] ss:$8 sm:$0xf]
      %v744 = vld [vmem:[%s742] ss:$8 sm:$0xf0]
      %v745 = vor.u32 %v743, %v744
      %v746 = vmul.f32 %v745, %v408
      %v747 = vadd.f32 %v741, %v746
      %s748 = scalar_lea.vmem %s284, 6
      %v749 = vld [vmem:[%s748] ss:$8 sm:$0xf]
      %v750 = vld [vmem:[%s748] ss:$8 sm:$0xf0]
      %v751 = vor.u32 %v749, %v750
      %v752 = vmul.f32 %v751, %v416
      %v753 = vadd.f32 %v747, %v752
      %s754 = scalar_lea.vmem %s193, 14
      %v755 = vld [vmem:[%s754] ss:$8 sm:$0xf]
      %v756 = vld [vmem:[%s754] ss:$8 sm:$0xf0]
      %v757 = vor.u32 %v755, %v756
      %v758 = vmul.f32 %v757, %v478
      %v759 = vadd.f32 %v753, %v758
      %v760 = vmax.f32 %v759, 0.0
      %s761 = scalar_lea.vmem %s207, 5
      %762 = vst.msk [vmem:[%s761] ss:$8 sm:$0xf] %vm486, %v760
      %763 = vst.msk [vmem:[%s761] ss:$8 sm:$0x70] %vm486, %v760
      %v764 = vld [vmem:[%s742] ss:$8 sm:$0xf]
      %v765 = vld [vmem:[%s742] ss:$8 sm:$0xf0]
      %v766 = vor.u32 %v764, %v765
      %v767 = vmul.f32 %v766, %v280
      %v768 = vadd.f32 %v222, %v767
      %v769 = vld [vmem:[%s748] ss:$8 sm:$0xf]
      %v770 = vld [vmem:[%s748] ss:$8 sm:$0xf0]
      %v771 = vor.u32 %v769, %v770
      %v772 = vmul.f32 %v771, %v304
      %v773 = vadd.f32 %v768, %v772
      %v774 = vld [vmem:[%s754] ss:$8 sm:$0xf]
      %v775 = vld [vmem:[%s754] ss:$8 sm:$0xf0]
      %v776 = vor.u32 %v774, %v775
      %v777 = vmul.f32 %v776, %v312
      %v778 = vadd.f32 %v773, %v777
      %s779 = scalar_lea.vmem %s316, 6
      %v780 = vld [vmem:[%s779] ss:$8 sm:$0xf]
      %v781 = vld [vmem:[%s779] ss:$8 sm:$0xf0]
      %v782 = vor.u32 %v780, %v781
      %v783 = vmul.f32 %v782, %v320
      %v784 = vadd.f32 %v778, %v783
      %s785 = scalar_lea.vmem %s324, 6
      %v786 = vld [vmem:[%s785] ss:$8 sm:$0xf]
      %v787 = vld [vmem:[%s785] ss:$8 sm:$0xf0]
      %v788 = vor.u32 %v786, %v787
      %v789 = vmul.f32 %v788, %v376
      %v790 = vadd.f32 %v784, %v789
      %s791 = scalar_lea.vmem %s316, 14
      %v792 = vld [vmem:[%s791] ss:$8 sm:$0xf]
      %v793 = vld [vmem:[%s791] ss:$8 sm:$0xf0]
      %v794 = vor.u32 %v792, %v793
      %v795 = vmul.f32 %v794, %v400
      %v796 = vadd.f32 %v790, %v795
      %s797 = scalar_lea.vmem %s193, 7
      %v798 = vld [vmem:[%s797] ss:$8 sm:$0xf]
      %v799 = vld [vmem:[%s797] ss:$8 sm:$0xf0]
      %v800 = vor.u32 %v798, %v799
      %v801 = vmul.f32 %v800, %v408
      %v802 = vadd.f32 %v796, %v801
      %s803 = scalar_lea.vmem %s284, 7
      %v804 = vld [vmem:[%s803] ss:$8 sm:$0xf]
      %v805 = vld [vmem:[%s803] ss:$8 sm:$0xf0]
      %v806 = vor.u32 %v804, %v805
      %v807 = vmul.f32 %v806, %v416
      %v808 = vadd.f32 %v802, %v807
      %s809 = scalar_lea.vmem %s193, 15
      %v810 = vld [vmem:[%s809] ss:$8 sm:$0xf]
      %v811 = vld [vmem:[%s809] ss:$8 sm:$0xf0]
      %v812 = vor.u32 %v810, %v811
      %v813 = vmul.f32 %v812, %v478
      %v814 = vadd.f32 %v808, %v813
      %v815 = vmax.f32 %v814, 0.0
      %s816 = scalar_lea.vmem %s207, 6
      %817 = vst.msk [vmem:[%s816] ss:$8 sm:$0xf] %vm486, %v815
      %818 = vst.msk [vmem:[%s816] ss:$8 sm:$0x70] %vm486, %v815
      %p819 = scmp.lt.s32.totalorder %s14, 1
      %s820 = scalar_select %p819, %s14, 1
      %s821 = smul.addr %s820, 7
      %s822 = smul.addr %s821, 8
      %s823 = scalar_lea.vmem %s3, %s822
      // Predicated region
      $region33: #{patches_block_forward.1} parent=31 // pred_check
        %p824 = pneg %p110
      $region34: #{patches_block_forward.1} parent=31 // pred_check_branch
        %826 = sbr.rel (%p824) target = $region36
      $region35: #{patches_block_forward.1} parent=31 // pred_region
        _
      $region36: #{patches_block_forward.1} parent=31 // pred_fallthru
        _
    $region32: #{patches_block_forward.1} parent=5 // pred_fallthru
      _
    %p827 = scmp.le.s32.totalorder 2, %s9
    // Predicated region
    $region37: #{patches_block_forward.1} parent=5 // pred_check
      %p828 = pneg %p827
    $region38: #{patches_block_forward.1} parent=5 // pred_check_branch
      %830 = sbr.rel (%p828) target = $region40
    $region39: #{patches_block_forward.1} parent=5 // pred_region
      %s831 = ssub.s32 %s9, 2
      // Predicated region
      $region41: #{patches_block_forward.1} parent=39 // pred_check
        %p832 = pneg %p116
      $region42: #{patches_block_forward.1} parent=39 // pred_check_branch
        %834 = sbr.rel (%p832) target = $region44
      $region43: #{patches_block_forward.1} parent=39 // pred_region
        %p835 = scmp.lt.s32.totalorder %s15, 1
        %s836 = scalar_select %p835, %s15, 1
        %s837 = smul.addr %s836, 7
        %s838 = smul.addr %s837, 8
        %s839 = scalar_lea.vmem %s3, %s838
      $region44: #{patches_block_forward.1} parent=39 // pred_fallthru
        _
    $region40: #{patches_block_forward.1} parent=5 // pred_fallthru
      _
  $region6: #{patches_block_forward.1} parent=0 // loop_footer
    %s13 = sadd.s32 1, %s9
  $region7: #{patches_block_forward.1} parent=0 // loop_footer_branch
    %8 = sbr.rel target = $region3
  $region8: #{patches_block_forward.1} parent=0 // loop_exit
    _

</llo_original>
